<compile_context>
chip_gen: v6e
topology: v6e:2x2x1
jax: 0.10.0
libtpu: 0.0.40
codegen_flags: <defaults>
</compile_context>

<pallas_src>
import functools

import jax
import jax.numpy as jnp
from jax.experimental import pallas as pl
from jax.experimental.pallas import tpu as pltpu


HIDDEN = 18
INPUT = 18
GP = 128          # per-gate lane slot (128-lane aligned)
HP = 128          # padded hidden / contraction dim for the recurrence matmul


def _lstm_kernel(x_ref, wih_ref, whh_ref, b_ref, wlin_ref, blin_ref,
                 out_ref, pre_scr, hs_scr, *, seq_len, bp):
    """x_ref:   (T*Bp, I)  f32, time-major, batch padded to Bp (multiple of 8)
       wih_ref: (I, 4*GP)  f32, gate slots [i, f, o, g], lanes >= H zero
       whh_ref: (HP, 4*GP) bf16, rows >= H zero, same gate slots
       b_ref:   (1, 4*GP)  f32, b_ih + b_hh packed into the gate slots
       wlin_ref:(HP, 1)    f32, rows >= H zero
       blin_ref:(1, 1)     f32
       out_ref: (T*Bp, 1)  f32
       pre_scr: (T*Bp, 4*GP) f32 VMEM scratch (hoisted input projection)
       hs_scr:  (T*Bp, HP)   f32 VMEM scratch (per-step hidden states)"""
    # Hoisted input projection: one MXU matmul covering every time step,
    # staged to VMEM so it does not occupy vregs across the whole recurrence.
    pre_scr[...] = (
        jnp.dot(x_ref[...], wih_ref[...], preferred_element_type=jnp.float32)
        + b_ref[...])

    whh = whh_ref[...]                                   # (HP, 4*GP) bf16

    h = jnp.zeros((bp, HP), jnp.float32)
    c = jnp.zeros((bp, HP), jnp.float32)

    # Sequential recurrence, fully unrolled (seq_len is static and small).
    for t in range(seq_len):
        gates = pre_scr[t * bp:(t + 1) * bp, :] + jnp.dot(
            h.astype(jnp.bfloat16), whh,
            preferred_element_type=jnp.float32)          # (Bp, 4*GP)

        # Gate slots are [i, f, o, g]; sigmoid gates are contiguous, so one
        # tanh covers all three:  sigmoid(x) = 0.5 * (1 + tanh(0.5 * x)).
        sig = 0.5 * (jnp.tanh(0.5 * gates[:, :3 * GP]) + 1.0)   # (Bp, 3*GP)
        i_g = sig[:, 0 * GP:1 * GP]
        f_g = sig[:, 1 * GP:2 * GP]
        o_g = sig[:, 2 * GP:3 * GP]
        g_g = jnp.tanh(gates[:, 3 * GP:4 * GP])

        c = f_g * c + i_g * g_g
        h = o_g * jnp.tanh(c)
        # unmasked, lane/sublane-aligned full-vreg store of this step's hidden
        hs_scr[t * bp:(t + 1) * bp, :] = h

    # Deferred output projection: one (T*Bp, HP) @ (HP, 1) matmul, one store.
    y = (jnp.dot(hs_scr[...], wlin_ref[...], preferred_element_type=jnp.float32)
         + blin_ref[...])
    out_ref[...] = y


@jax.jit
def lstm_forward(x, w_ih, w_hh, b_ih, b_hh, w_lin, b_lin):
    """x: (B, T, INPUT) f32.  PyTorch-shaped params:
       w_ih (4H, I), w_hh (4H, H), b_ih (4H,), b_hh (4H,), w_lin (1, H), b_lin (1,)."""
    B, T, I = x.shape
    H = HIDDEN
    BP = ((B + 7) // 8) * 8            # pad batch to a sublane multiple

    # ---- Wrapper-side layout prep (plain XLA glue, negligible cost) --------
    w_ih_f = w_ih.astype(jnp.float32)                    # (4H, I)
    w_hh_f = w_hh.astype(jnp.float32)                    # (4H, H)
    b_f = (b_ih + b_hh).astype(jnp.float32)              # (4H,)

    # PyTorch gate row blocks: i=[0:H], f=[H:2H], g=[2H:3H], o=[3H:4H].
    # Reorder to slots [i, f, o, g] so the sigmoid gates are contiguous, and
    # give every gate its own 128-lane slot (padding lanes stay zero).
    slot_to_gate = (0, 1, 3, 2)
    wih_p = jnp.zeros((I, 4 * GP), jnp.float32)
    whh_p = jnp.zeros((HP, 4 * GP), jnp.float32)
    b_p = jnp.zeros((1, 4 * GP), jnp.float32)
    for s, g in enumerate(slot_to_gate):
        rows = slice(g * H, (g + 1) * H)
        wih_p = wih_p.at[:, s * GP:s * GP + H].set(w_ih_f[rows, :].T)
        whh_p = whh_p.at[:H, s * GP:s * GP + H].set(w_hh_f[rows, :].T)
        b_p = b_p.at[0, s * GP:s * GP + H].set(b_f[rows])
    whh_bf = whh_p.astype(jnp.bfloat16)                  # bf16 MXU operand

    wlin_p = jnp.zeros((HP, 1), jnp.float32).at[:H, :].set(
        jnp.transpose(w_lin).astype(jnp.float32))        # (HP, 1)
    blin = b_lin.reshape(1, 1).astype(jnp.float32)

    # (B, T, I) -> time-major (T, Bp, I) -> (T*Bp, I), batch zero-padded.
    xt = jnp.transpose(x.astype(jnp.float32), (1, 0, 2))
    xt = jnp.pad(xt, ((0, 0), (0, BP - B), (0, 0)))
    x_flat = xt.reshape(T * BP, I)

    kernel = functools.partial(_lstm_kernel, seq_len=T, bp=BP)
    y_flat = pl.pallas_call(
        kernel,
        out_shape=jax.ShapeDtypeStruct((T * BP, 1), jnp.float32),
        in_specs=[pl.BlockSpec(memory_space=pltpu.MemorySpace.VMEM)] * 6,
        out_specs=pl.BlockSpec(memory_space=pltpu.MemorySpace.VMEM),
        scratch_shapes=[
            pltpu.VMEM((T * BP, 4 * GP), jnp.float32),   # pre_scr
            pltpu.VMEM((T * BP, HP), jnp.float32),       # hs_scr
        ],
    )(x_flat, wih_p, whh_bf, b_p, wlin_p, blin)

    # (T*Bp, 1) -> (B, T, 1), dropping padded batch rows.
    y = y_flat.reshape(T, BP, 1)[:, :B, :]
    return jnp.transpose(y, (1, 0, 2))


def lstm_reference(x, w_ih, w_hh, b_ih, b_hh, w_lin, b_lin):
    """Pure-JAX reference matching torch.nn.LSTM + Linear semantics."""
    B, T, _ = x.shape
    H = HIDDEN
    h = jnp.zeros((B, H), jnp.float32)
    c = jnp.zeros((B, H), jnp.float32)
    outs = []
    for t in range(T):
        gates = x[:, t, :] @ w_ih.T + b_ih + h @ w_hh.T + b_hh
        i_g = jax.nn.sigmoid(gates[:, 0 * H:1 * H])
        f_g = jax.nn.sigmoid(gates[:, 1 * H:2 * H])
        g_g = jnp.tanh(gates[:, 2 * H:3 * H])
        o_g = jax.nn.sigmoid(gates[:, 3 * H:4 * H])
        c = f_g * c + i_g * g_g
        h = o_g * jnp.tanh(c)
        outs.append(h @ w_lin.T + b_lin)
    return jnp.stack(outs, axis=1)   # (B, T, 1)


if __name__ == "__main__":
    key = jax.random.PRNGKey(0)
    B, T, I, H = 2, 8, INPUT, HIDDEN

    k = jax.random.split(key, 8)
    # deterministic init mimicking PyTorch's U(-1/sqrt(H), 1/sqrt(H))
    bound = 1.0 / jnp.sqrt(jnp.float32(H))
    w_ih = jax.random.uniform(k[0], (4 * H, I), jnp.float32, -bound, bound)
    w_hh = jax.random.uniform(k[1], (4 * H, H), jnp.float32, -bound, bound)
    b_ih = jax.random.uniform(k[2], (4 * H,), jnp.float32, -bound, bound)
    b_hh = jax.random.uniform(k[3], (4 * H,), jnp.float32, -bound, bound)
    w_lin = jax.random.uniform(k[4], (1, H), jnp.float32, -bound, bound)
    b_lin = jax.random.uniform(k[5], (1,), jnp.float32, -bound, bound)

    x = jax.random.normal(k[6], (B, T, I), jnp.float32)

    out = lstm_forward(x, w_ih, w_hh, b_ih, b_hh, w_lin, b_lin)
    out = jax.block_until_ready(out)

    ref = lstm_reference(x, w_ih, w_hh, b_ih, b_hh, w_lin, b_lin)
    assert out.shape == (B, T, 1), out.shape
    # Tolerance accounts for the intentional bf16 MXU operands on the
    # recurrence matmul (accumulation stays in f32).
    assert jnp.allclose(out, ref, atol=5e-3, rtol=5e-3), (
        float(jnp.max(jnp.abs(out - ref))))

    print("KERNEL_OK")
</pallas_src>

<mosaic_0001>
module attributes {stable_mosaic.version = 11 : i64} {
  func.func @_lstm_kernel(%arg0: memref<64x18xf32, #tpu.memory_space<vmem>>, %arg1: memref<18x512xf32, #tpu.memory_space<vmem>>, %arg2: memref<128x512xbf16, #tpu.memory_space<vmem>>, %arg3: memref<1x512xf32, #tpu.memory_space<vmem>>, %arg4: memref<128x1xf32, #tpu.memory_space<vmem>>, %arg5: memref<1x1xf32, #tpu.memory_space<vmem>>, %arg6: memref<64x1xf32, #tpu.memory_space<vmem>>, %arg7: memref<64x512xf32, #tpu.memory_space<vmem>>, %arg8: memref<64x128xf32, #tpu.memory_space<vmem>>) attributes {dimension_semantics = [], scalar_prefetch = 0 : i64, scratch_operands = 2 : i64, tpu.core_type = #tpu.core_type<tc>} {
    %c0 = arith.constant 0 : index
    %c0_0 = arith.constant 0 : index
    %0 = vector.load %arg0[%c0, %c0_0] : memref<64x18xf32, #tpu.memory_space<vmem>>, vector<64x18xf32>
    %c0_1 = arith.constant 0 : index
    %c0_2 = arith.constant 0 : index
    %1 = vector.load %arg1[%c0_1, %c0_2] : memref<18x512xf32, #tpu.memory_space<vmem>>, vector<18x512xf32>
    %cst = arith.constant dense<0.000000e+00> : vector<64x512xf32>
    %2 = tpu.matmul %0, %1, %cst {dimension_numbers = #tpu.dot_dimension_numbers<[1], [0], [0], [1], [0, 0, 1, 1], [], []>} : vector<64x18xf32>, vector<18x512xf32>, vector<64x512xf32> -> vector<64x512xf32>
    %c0_3 = arith.constant 0 : index
    %c0_4 = arith.constant 0 : index
    %3 = vector.load %arg3[%c0_3, %c0_4] : memref<1x512xf32, #tpu.memory_space<vmem>>, vector<1x512xf32>
    %4 = vector.broadcast %3 : vector<1x512xf32> to vector<64x512xf32>
    %5 = arith.addf %2, %4 : vector<64x512xf32>
    %c0_5 = arith.constant 0 : index
    %c0_6 = arith.constant 0 : index
    %6 = vector.load %arg7[%c0_5, %c0_6] : memref<64x512xf32, #tpu.memory_space<vmem>>, vector<64x512xf32>
    tpu.vector_store %arg7[%c0_5, %c0_6], %5 {strides = array<i32>} : memref<64x512xf32, #tpu.memory_space<vmem>>, vector<64x512xf32>,
    %c0_7 = arith.constant 0 : index
    %c0_8 = arith.constant 0 : index
    %7 = vector.load %arg2[%c0_7, %c0_8] : memref<128x512xbf16, #tpu.memory_space<vmem>>, vector<128x512xbf16>
    %cst_9 = arith.constant 0.000000e+00 : f32
    %8 = vector.broadcast %cst_9 : f32 to vector<8x128xf32>
    %cst_10 = arith.constant 0.000000e+00 : f32
    %9 = vector.broadcast %cst_10 : f32 to vector<8x128xf32>
    %c0_11 = arith.constant 0 : index
    %c0_12 = arith.constant 0 : index
    %10 = vector.load %arg7[%c0_11, %c0_12] : memref<64x512xf32, #tpu.memory_space<vmem>>, vector<8x512xf32>
    %11 = arith.truncf %8 : vector<8x128xf32> to vector<8x128xbf16>
    %cst_13 = arith.constant dense<0.000000e+00> : vector<8x512xf32>
    %12 = tpu.matmul %11, %7, %cst_13 {dimension_numbers = #tpu.dot_dimension_numbers<[1], [0], [0], [1], [0, 0, 1, 1], [], []>} : vector<8x128xbf16>, vector<128x512xbf16>, vector<8x512xf32> -> vector<8x512xf32>
    %13 = arith.addf %10, %12 : vector<8x512xf32>
    %14 = vector.extract_strided_slice %13 {offsets = [0, 0], sizes = [8, 384], strides = [1, 1]} : vector<8x512xf32> to vector<8x384xf32>
    %cst_14 = arith.constant 5.000000e-01 : f32
    %15 = vector.broadcast %cst_14 : f32 to vector<8x384xf32>
    %16 = arith.mulf %15, %14 : vector<8x384xf32>
    %17 = math.tanh %16 : vector<8x384xf32>
    %cst_15 = arith.constant 1.000000e+00 : f32
    %18 = vector.broadcast %cst_15 : f32 to vector<8x384xf32>
    %19 = arith.addf %17, %18 : vector<8x384xf32>
    %cst_16 = arith.constant 5.000000e-01 : f32
    %20 = vector.broadcast %cst_16 : f32 to vector<8x384xf32>
    %21 = arith.mulf %20, %19 : vector<8x384xf32>
    %22 = vector.extract_strided_slice %21 {offsets = [0, 0], sizes = [8, 128], strides = [1, 1]} : vector<8x384xf32> to vector<8x128xf32>
    %23 = vector.extract_strided_slice %21 {offsets = [0, 128], sizes = [8, 128], strides = [1, 1]} : vector<8x384xf32> to vector<8x128xf32>
    %24 = vector.extract_strided_slice %21 {offsets = [0, 256], sizes = [8, 128], strides = [1, 1]} : vector<8x384xf32> to vector<8x128xf32>
    %25 = vector.extract_strided_slice %13 {offsets = [0, 384], sizes = [8, 128], strides = [1, 1]} : vector<8x512xf32> to vector<8x128xf32>
    %26 = math.tanh %25 : vector<8x128xf32>
    %27 = arith.mulf %23, %9 : vector<8x128xf32>
    %28 = arith.mulf %22, %26 : vector<8x128xf32>
    %29 = arith.addf %27, %28 : vector<8x128xf32>
    %30 = math.tanh %29 : vector<8x128xf32>
    %31 = arith.mulf %24, %30 : vector<8x128xf32>
    %c0_17 = arith.constant 0 : index
    %c0_18 = arith.constant 0 : index
    %32 = vector.load %arg8[%c0_17, %c0_18] : memref<64x128xf32, #tpu.memory_space<vmem>>, vector<8x128xf32>
    tpu.vector_store %arg8[%c0_17, %c0_18], %31 {strides = array<i32>} : memref<64x128xf32, #tpu.memory_space<vmem>>, vector<8x128xf32>,
    %c8 = arith.constant 8 : index
    %c0_19 = arith.constant 0 : index
    %33 = vector.load %arg7[%c8, %c0_19] : memref<64x512xf32, #tpu.memory_space<vmem>>, vector<8x512xf32>
    %34 = arith.truncf %31 : vector<8x128xf32> to vector<8x128xbf16>
    %cst_20 = arith.constant dense<0.000000e+00> : vector<8x512xf32>
    %35 = tpu.matmul %34, %7, %cst_20 {dimension_numbers = #tpu.dot_dimension_numbers<[1], [0], [0], [1], [0, 0, 1, 1], [], []>} : vector<8x128xbf16>, vector<128x512xbf16>, vector<8x512xf32> -> vector<8x512xf32>
    %36 = arith.addf %33, %35 : vector<8x512xf32>
    %37 = vector.extract_strided_slice %36 {offsets = [0, 0], sizes = [8, 384], strides = [1, 1]} : vector<8x512xf32> to vector<8x384xf32>
    %cst_21 = arith.constant 5.000000e-01 : f32
    %38 = vector.broadcast %cst_21 : f32 to vector<8x384xf32>
    %39 = arith.mulf %38, %37 : vector<8x384xf32>
    %40 = math.tanh %39 : vector<8x384xf32>
    %cst_22 = arith.constant 1.000000e+00 : f32
    %41 = vector.broadcast %cst_22 : f32 to vector<8x384xf32>
    %42 = arith.addf %40, %41 : vector<8x384xf32>
    %cst_23 = arith.constant 5.000000e-01 : f32
    %43 = vector.broadcast %cst_23 : f32 to vector<8x384xf32>
    %44 = arith.mulf %43, %42 : vector<8x384xf32>
    %45 = vector.extract_strided_slice %44 {offsets = [0, 0], sizes = [8, 128], strides = [1, 1]} : vector<8x384xf32> to vector<8x128xf32>
    %46 = vector.extract_strided_slice %44 {offsets = [0, 128], sizes = [8, 128], strides = [1, 1]} : vector<8x384xf32> to vector<8x128xf32>
    %47 = vector.extract_strided_slice %44 {offsets = [0, 256], sizes = [8, 128], strides = [1, 1]} : vector<8x384xf32> to vector<8x128xf32>
    %48 = vector.extract_strided_slice %36 {offsets = [0, 384], sizes = [8, 128], strides = [1, 1]} : vector<8x512xf32> to vector<8x128xf32>
    %49 = math.tanh %48 : vector<8x128xf32>
    %50 = arith.mulf %46, %29 : vector<8x128xf32>
    %51 = arith.mulf %45, %49 : vector<8x128xf32>
    %52 = arith.addf %50, %51 : vector<8x128xf32>
    %53 = math.tanh %52 : vector<8x128xf32>
    %54 = arith.mulf %47, %53 : vector<8x128xf32>
    %c8_24 = arith.constant 8 : index
    %c0_25 = arith.constant 0 : index
    %55 = vector.load %arg8[%c8_24, %c0_25] : memref<64x128xf32, #tpu.memory_space<vmem>>, vector<8x128xf32>
    tpu.vector_store %arg8[%c8_24, %c0_25], %54 {strides = array<i32>} : memref<64x128xf32, #tpu.memory_space<vmem>>, vector<8x128xf32>,
    %c16 = arith.constant 16 : index
    %c0_26 = arith.constant 0 : index
    %56 = vector.load %arg7[%c16, %c0_26] : memref<64x512xf32, #tpu.memory_space<vmem>>, vector<8x512xf32>
    %57 = arith.truncf %54 : vector<8x128xf32> to vector<8x128xbf16>
    %cst_27 = arith.constant dense<0.000000e+00> : vector<8x512xf32>
    %58 = tpu.matmul %57, %7, %cst_27 {dimension_numbers = #tpu.dot_dimension_numbers<[1], [0], [0], [1], [0, 0, 1, 1], [], []>} : vector<8x128xbf16>, vector<128x512xbf16>, vector<8x512xf32> -> vector<8x512xf32>
    %59 = arith.addf %56, %58 : vector<8x512xf32>
    %60 = vector.extract_strided_slice %59 {offsets = [0, 0], sizes = [8, 384], strides = [1, 1]} : vector<8x512xf32> to vector<8x384xf32>
    %cst_28 = arith.constant 5.000000e-01 : f32
    %61 = vector.broadcast %cst_28 : f32 to vector<8x384xf32>
    %62 = arith.mulf %61, %60 : vector<8x384xf32>
    %63 = math.tanh %62 : vector<8x384xf32>
    %cst_29 = arith.constant 1.000000e+00 : f32
    %64 = vector.broadcast %cst_29 : f32 to vector<8x384xf32>
    %65 = arith.addf %63, %64 : vector<8x384xf32>
    %cst_30 = arith.constant 5.000000e-01 : f32
    %66 = vector.broadcast %cst_30 : f32 to vector<8x384xf32>
    %67 = arith.mulf %66, %65 : vector<8x384xf32>
    %68 = vector.extract_strided_slice %67 {offsets = [0, 0], sizes = [8, 128], strides = [1, 1]} : vector<8x384xf32> to vector<8x128xf32>
    %69 = vector.extract_strided_slice %67 {offsets = [0, 128], sizes = [8, 128], strides = [1, 1]} : vector<8x384xf32> to vector<8x128xf32>
    %70 = vector.extract_strided_slice %67 {offsets = [0, 256], sizes = [8, 128], strides = [1, 1]} : vector<8x384xf32> to vector<8x128xf32>
    %71 = vector.extract_strided_slice %59 {offsets = [0, 384], sizes = [8, 128], strides = [1, 1]} : vector<8x512xf32> to vector<8x128xf32>
    %72 = math.tanh %71 : vector<8x128xf32>
    %73 = arith.mulf %69, %52 : vector<8x128xf32>
    %74 = arith.mulf %68, %72 : vector<8x128xf32>
    %75 = arith.addf %73, %74 : vector<8x128xf32>
    %76 = math.tanh %75 : vector<8x128xf32>
    %77 = arith.mulf %70, %76 : vector<8x128xf32>
    %c16_31 = arith.constant 16 : index
    %c0_32 = arith.constant 0 : index
    %78 = vector.load %arg8[%c16_31, %c0_32] : memref<64x128xf32, #tpu.memory_space<vmem>>, vector<8x128xf32>
    tpu.vector_store %arg8[%c16_31, %c0_32], %77 {strides = array<i32>} : memref<64x128xf32, #tpu.memory_space<vmem>>, vector<8x128xf32>,
    %c24 = arith.constant 24 : index
    %c0_33 = arith.constant 0 : index
    %79 = vector.load %arg7[%c24, %c0_33] : memref<64x512xf32, #tpu.memory_space<vmem>>, vector<8x512xf32>
    %80 = arith.truncf %77 : vector<8x128xf32> to vector<8x128xbf16>
    %cst_34 = arith.constant dense<0.000000e+00> : vector<8x512xf32>
    %81 = tpu.matmul %80, %7, %cst_34 {dimension_numbers = #tpu.dot_dimension_numbers<[1], [0], [0], [1], [0, 0, 1, 1], [], []>} : vector<8x128xbf16>, vector<128x512xbf16>, vector<8x512xf32> -> vector<8x512xf32>
    %82 = arith.addf %79, %81 : vector<8x512xf32>
    %83 = vector.extract_strided_slice %82 {offsets = [0, 0], sizes = [8, 384], strides = [1, 1]} : vector<8x512xf32> to vector<8x384xf32>
    %cst_35 = arith.constant 5.000000e-01 : f32
    %84 = vector.broadcast %cst_35 : f32 to vector<8x384xf32>
    %85 = arith.mulf %84, %83 : vector<8x384xf32>
    %86 = math.tanh %85 : vector<8x384xf32>
    %cst_36 = arith.constant 1.000000e+00 : f32
    %87 = vector.broadcast %cst_36 : f32 to vector<8x384xf32>
    %88 = arith.addf %86, %87 : vector<8x384xf32>
    %cst_37 = arith.constant 5.000000e-01 : f32
    %89 = vector.broadcast %cst_37 : f32 to vector<8x384xf32>
    %90 = arith.mulf %89, %88 : vector<8x384xf32>
    %91 = vector.extract_strided_slice %90 {offsets = [0, 0], sizes = [8, 128], strides = [1, 1]} : vector<8x384xf32> to vector<8x128xf32>
    %92 = vector.extract_strided_slice %90 {offsets = [0, 128], sizes = [8, 128], strides = [1, 1]} : vector<8x384xf32> to vector<8x128xf32>
    %93 = vector.extract_strided_slice %90 {offsets = [0, 256], sizes = [8, 128], strides = [1, 1]} : vector<8x384xf32> to vector<8x128xf32>
    %94 = vector.extract_strided_slice %82 {offsets = [0, 384], sizes = [8, 128], strides = [1, 1]} : vector<8x512xf32> to vector<8x128xf32>
    %95 = math.tanh %94 : vector<8x128xf32>
    %96 = arith.mulf %92, %75 : vector<8x128xf32>
    %97 = arith.mulf %91, %95 : vector<8x128xf32>
    %98 = arith.addf %96, %97 : vector<8x128xf32>
    %99 = math.tanh %98 : vector<8x128xf32>
    %100 = arith.mulf %93, %99 : vector<8x128xf32>
    %c24_38 = arith.constant 24 : index
    %c0_39 = arith.constant 0 : index
    %101 = vector.load %arg8[%c24_38, %c0_39] : memref<64x128xf32, #tpu.memory_space<vmem>>, vector<8x128xf32>
    tpu.vector_store %arg8[%c24_38, %c0_39], %100 {strides = array<i32>} : memref<64x128xf32, #tpu.memory_space<vmem>>, vector<8x128xf32>,
    %c32 = arith.constant 32 : index
    %c0_40 = arith.constant 0 : index
    %102 = vector.load %arg7[%c32, %c0_40] : memref<64x512xf32, #tpu.memory_space<vmem>>, vector<8x512xf32>
    %103 = arith.truncf %100 : vector<8x128xf32> to vector<8x128xbf16>
    %cst_41 = arith.constant dense<0.000000e+00> : vector<8x512xf32>
    %104 = tpu.matmul %103, %7, %cst_41 {dimension_numbers = #tpu.dot_dimension_numbers<[1], [0], [0], [1], [0, 0, 1, 1], [], []>} : vector<8x128xbf16>, vector<128x512xbf16>, vector<8x512xf32> -> vector<8x512xf32>
    %105 = arith.addf %102, %104 : vector<8x512xf32>
    %106 = vector.extract_strided_slice %105 {offsets = [0, 0], sizes = [8, 384], strides = [1, 1]} : vector<8x512xf32> to vector<8x384xf32>
    %cst_42 = arith.constant 5.000000e-01 : f32
    %107 = vector.broadcast %cst_42 : f32 to vector<8x384xf32>
    %108 = arith.mulf %107, %106 : vector<8x384xf32>
    %109 = math.tanh %108 : vector<8x384xf32>
    %cst_43 = arith.constant 1.000000e+00 : f32
    %110 = vector.broadcast %cst_43 : f32 to vector<8x384xf32>
    %111 = arith.addf %109, %110 : vector<8x384xf32>
    %cst_44 = arith.constant 5.000000e-01 : f32
    %112 = vector.broadcast %cst_44 : f32 to vector<8x384xf32>
    %113 = arith.mulf %112, %111 : vector<8x384xf32>
    %114 = vector.extract_strided_slice %113 {offsets = [0, 0], sizes = [8, 128], strides = [1, 1]} : vector<8x384xf32> to vector<8x128xf32>
    %115 = vector.extract_strided_slice %113 {offsets = [0, 128], sizes = [8, 128], strides = [1, 1]} : vector<8x384xf32> to vector<8x128xf32>
    %116 = vector.extract_strided_slice %113 {offsets = [0, 256], sizes = [8, 128], strides = [1, 1]} : vector<8x384xf32> to vector<8x128xf32>
    %117 = vector.extract_strided_slice %105 {offsets = [0, 384], sizes = [8, 128], strides = [1, 1]} : vector<8x512xf32> to vector<8x128xf32>
    %118 = math.tanh %117 : vector<8x128xf32>
    %119 = arith.mulf %115, %98 : vector<8x128xf32>
    %120 = arith.mulf %114, %118 : vector<8x128xf32>
    %121 = arith.addf %119, %120 : vector<8x128xf32>
    %122 = math.tanh %121 : vector<8x128xf32>
    %123 = arith.mulf %116, %122 : vector<8x128xf32>
    %c32_45 = arith.constant 32 : index
    %c0_46 = arith.constant 0 : index
    %124 = vector.load %arg8[%c32_45, %c0_46] : memref<64x128xf32, #tpu.memory_space<vmem>>, vector<8x128xf32>
    tpu.vector_store %arg8[%c32_45, %c0_46], %123 {strides = array<i32>} : memref<64x128xf32, #tpu.memory_space<vmem>>, vector<8x128xf32>,
    %c40 = arith.constant 40 : index
    %c0_47 = arith.constant 0 : index
    %125 = vector.load %arg7[%c40, %c0_47] : memref<64x512xf32, #tpu.memory_space<vmem>>, vector<8x512xf32>
    %126 = arith.truncf %123 : vector<8x128xf32> to vector<8x128xbf16>
    %cst_48 = arith.constant dense<0.000000e+00> : vector<8x512xf32>
    %127 = tpu.matmul %126, %7, %cst_48 {dimension_numbers = #tpu.dot_dimension_numbers<[1], [0], [0], [1], [0, 0, 1, 1], [], []>} : vector<8x128xbf16>, vector<128x512xbf16>, vector<8x512xf32> -> vector<8x512xf32>
    %128 = arith.addf %125, %127 : vector<8x512xf32>
    %129 = vector.extract_strided_slice %128 {offsets = [0, 0], sizes = [8, 384], strides = [1, 1]} : vector<8x512xf32> to vector<8x384xf32>
    %cst_49 = arith.constant 5.000000e-01 : f32
    %130 = vector.broadcast %cst_49 : f32 to vector<8x384xf32>
    %131 = arith.mulf %130, %129 : vector<8x384xf32>
    %132 = math.tanh %131 : vector<8x384xf32>
    %cst_50 = arith.constant 1.000000e+00 : f32
    %133 = vector.broadcast %cst_50 : f32 to vector<8x384xf32>
    %134 = arith.addf %132, %133 : vector<8x384xf32>
    %cst_51 = arith.constant 5.000000e-01 : f32
    %135 = vector.broadcast %cst_51 : f32 to vector<8x384xf32>
    %136 = arith.mulf %135, %134 : vector<8x384xf32>
    %137 = vector.extract_strided_slice %136 {offsets = [0, 0], sizes = [8, 128], strides = [1, 1]} : vector<8x384xf32> to vector<8x128xf32>
    %138 = vector.extract_strided_slice %136 {offsets = [0, 128], sizes = [8, 128], strides = [1, 1]} : vector<8x384xf32> to vector<8x128xf32>
    %139 = vector.extract_strided_slice %136 {offsets = [0, 256], sizes = [8, 128], strides = [1, 1]} : vector<8x384xf32> to vector<8x128xf32>
    %140 = vector.extract_strided_slice %128 {offsets = [0, 384], sizes = [8, 128], strides = [1, 1]} : vector<8x512xf32> to vector<8x128xf32>
    %141 = math.tanh %140 : vector<8x128xf32>
    %142 = arith.mulf %138, %121 : vector<8x128xf32>
    %143 = arith.mulf %137, %141 : vector<8x128xf32>
    %144 = arith.addf %142, %143 : vector<8x128xf32>
    %145 = math.tanh %144 : vector<8x128xf32>
    %146 = arith.mulf %139, %145 : vector<8x128xf32>
    %c40_52 = arith.constant 40 : index
    %c0_53 = arith.constant 0 : index
    %147 = vector.load %arg8[%c40_52, %c0_53] : memref<64x128xf32, #tpu.memory_space<vmem>>, vector<8x128xf32>
    tpu.vector_store %arg8[%c40_52, %c0_53], %146 {strides = array<i32>} : memref<64x128xf32, #tpu.memory_space<vmem>>, vector<8x128xf32>,
    %c48 = arith.constant 48 : index
    %c0_54 = arith.constant 0 : index
    %148 = vector.load %arg7[%c48, %c0_54] : memref<64x512xf32, #tpu.memory_space<vmem>>, vector<8x512xf32>
    %149 = arith.truncf %146 : vector<8x128xf32> to vector<8x128xbf16>
    %cst_55 = arith.constant dense<0.000000e+00> : vector<8x512xf32>
    %150 = tpu.matmul %149, %7, %cst_55 {dimension_numbers = #tpu.dot_dimension_numbers<[1], [0], [0], [1], [0, 0, 1, 1], [], []>} : vector<8x128xbf16>, vector<128x512xbf16>, vector<8x512xf32> -> vector<8x512xf32>
    %151 = arith.addf %148, %150 : vector<8x512xf32>
    %152 = vector.extract_strided_slice %151 {offsets = [0, 0], sizes = [8, 384], strides = [1, 1]} : vector<8x512xf32> to vector<8x384xf32>
    %cst_56 = arith.constant 5.000000e-01 : f32
    %153 = vector.broadcast %cst_56 : f32 to vector<8x384xf32>
    %154 = arith.mulf %153, %152 : vector<8x384xf32>
    %155 = math.tanh %154 : vector<8x384xf32>
    %cst_57 = arith.constant 1.000000e+00 : f32
    %156 = vector.broadcast %cst_57 : f32 to vector<8x384xf32>
    %157 = arith.addf %155, %156 : vector<8x384xf32>
    %cst_58 = arith.constant 5.000000e-01 : f32
    %158 = vector.broadcast %cst_58 : f32 to vector<8x384xf32>
    %159 = arith.mulf %158, %157 : vector<8x384xf32>
    %160 = vector.extract_strided_slice %159 {offsets = [0, 0], sizes = [8, 128], strides = [1, 1]} : vector<8x384xf32> to vector<8x128xf32>
    %161 = vector.extract_strided_slice %159 {offsets = [0, 128], sizes = [8, 128], strides = [1, 1]} : vector<8x384xf32> to vector<8x128xf32>
    %162 = vector.extract_strided_slice %159 {offsets = [0, 256], sizes = [8, 128], strides = [1, 1]} : vector<8x384xf32> to vector<8x128xf32>
    %163 = vector.extract_strided_slice %151 {offsets = [0, 384], sizes = [8, 128], strides = [1, 1]} : vector<8x512xf32> to vector<8x128xf32>
    %164 = math.tanh %163 : vector<8x128xf32>
    %165 = arith.mulf %161, %144 : vector<8x128xf32>
    %166 = arith.mulf %160, %164 : vector<8x128xf32>
    %167 = arith.addf %165, %166 : vector<8x128xf32>
    %168 = math.tanh %167 : vector<8x128xf32>
    %169 = arith.mulf %162, %168 : vector<8x128xf32>
    %c48_59 = arith.constant 48 : index
    %c0_60 = arith.constant 0 : index
    %170 = vector.load %arg8[%c48_59, %c0_60] : memref<64x128xf32, #tpu.memory_space<vmem>>, vector<8x128xf32>
    tpu.vector_store %arg8[%c48_59, %c0_60], %169 {strides = array<i32>} : memref<64x128xf32, #tpu.memory_space<vmem>>, vector<8x128xf32>,
    %c56 = arith.constant 56 : index
    %c0_61 = arith.constant 0 : index
    %171 = vector.load %arg7[%c56, %c0_61] : memref<64x512xf32, #tpu.memory_space<vmem>>, vector<8x512xf32>
    %172 = arith.truncf %169 : vector<8x128xf32> to vector<8x128xbf16>
    %cst_62 = arith.constant dense<0.000000e+00> : vector<8x512xf32>
    %173 = tpu.matmul %172, %7, %cst_62 {dimension_numbers = #tpu.dot_dimension_numbers<[1], [0], [0], [1], [0, 0, 1, 1], [], []>} : vector<8x128xbf16>, vector<128x512xbf16>, vector<8x512xf32> -> vector<8x512xf32>
    %174 = arith.addf %171, %173 : vector<8x512xf32>
    %175 = vector.extract_strided_slice %174 {offsets = [0, 0], sizes = [8, 384], strides = [1, 1]} : vector<8x512xf32> to vector<8x384xf32>
    %cst_63 = arith.constant 5.000000e-01 : f32
    %176 = vector.broadcast %cst_63 : f32 to vector<8x384xf32>
    %177 = arith.mulf %176, %175 : vector<8x384xf32>
    %178 = math.tanh %177 : vector<8x384xf32>
    %cst_64 = arith.constant 1.000000e+00 : f32
    %179 = vector.broadcast %cst_64 : f32 to vector<8x384xf32>
    %180 = arith.addf %178, %179 : vector<8x384xf32>
    %cst_65 = arith.constant 5.000000e-01 : f32
    %181 = vector.broadcast %cst_65 : f32 to vector<8x384xf32>
    %182 = arith.mulf %181, %180 : vector<8x384xf32>
    %183 = vector.extract_strided_slice %182 {offsets = [0, 0], sizes = [8, 128], strides = [1, 1]} : vector<8x384xf32> to vector<8x128xf32>
    %184 = vector.extract_strided_slice %182 {offsets = [0, 128], sizes = [8, 128], strides = [1, 1]} : vector<8x384xf32> to vector<8x128xf32>
    %185 = vector.extract_strided_slice %182 {offsets = [0, 256], sizes = [8, 128], strides = [1, 1]} : vector<8x384xf32> to vector<8x128xf32>
    %186 = vector.extract_strided_slice %174 {offsets = [0, 384], sizes = [8, 128], strides = [1, 1]} : vector<8x512xf32> to vector<8x128xf32>
    %187 = math.tanh %186 : vector<8x128xf32>
    %188 = arith.mulf %184, %167 : vector<8x128xf32>
    %189 = arith.mulf %183, %187 : vector<8x128xf32>
    %190 = arith.addf %188, %189 : vector<8x128xf32>
    %191 = math.tanh %190 : vector<8x128xf32>
    %192 = arith.mulf %185, %191 : vector<8x128xf32>
    %c56_66 = arith.constant 56 : index
    %c0_67 = arith.constant 0 : index
    %193 = vector.load %arg8[%c56_66, %c0_67] : memref<64x128xf32, #tpu.memory_space<vmem>>, vector<8x128xf32>
    tpu.vector_store %arg8[%c56_66, %c0_67], %192 {strides = array<i32>} : memref<64x128xf32, #tpu.memory_space<vmem>>, vector<8x128xf32>,
    %c0_68 = arith.constant 0 : index
    %c0_69 = arith.constant 0 : index
    %194 = vector.load %arg8[%c0_68, %c0_69] : memref<64x128xf32, #tpu.memory_space<vmem>>, vector<64x128xf32>
    %c0_70 = arith.constant 0 : index
    %c0_71 = arith.constant 0 : index
    %195 = vector.load %arg4[%c0_70, %c0_71] : memref<128x1xf32, #tpu.memory_space<vmem>>, vector<128x1xf32>
    %cst_72 = arith.constant dense<0.000000e+00> : vector<64x1xf32>
    %196 = tpu.matmul %194, %195, %cst_72 {dimension_numbers = #tpu.dot_dimension_numbers<[1], [0], [0], [1], [0, 0, 1, 1], [], []>} : vector<64x128xf32>, vector<128x1xf32>, vector<64x1xf32> -> vector<64x1xf32>
    %c0_73 = arith.constant 0 : index
    %c0_74 = arith.constant 0 : index
    %197 = vector.load %arg5[%c0_73, %c0_74] : memref<1x1xf32, #tpu.memory_space<vmem>>, vector<1x1xf32>
    %198 = vector.broadcast %197 : vector<1x1xf32> to vector<64x1xf32>
    %199 = arith.addf %196, %198 : vector<64x1xf32>
    %c0_75 = arith.constant 0 : index
    %c0_76 = arith.constant 0 : index
    %200 = vector.load %arg6[%c0_75, %c0_76] : memref<64x1xf32, #tpu.memory_space<vmem>>, vector<64x1xf32>
    tpu.vector_store %arg6[%c0_75, %c0_76], %199 {strides = array<i32>} : memref<64x1xf32, #tpu.memory_space<vmem>>, vector<64x1xf32>,
    return
  }
}

</mosaic_0001>

<llo_original>
// kernel: lstm_forward.1
$region0: #{lstm_forward.1}
  #allocation0 [shape = 'u32[]', space=smem, size = 0x4, offset = 0x4, fixed_abs, tag = 'smem constant byte address 0x4 - core index']
  #allocation1 [shape = 'u32[144,128]{1,0:T(1,128)}', space=vmem, size = 0x12000, scoped, tag = 'internal scratch']
  #allocation2 [shape = 'f32[64,512]{1,0:T(8,128)}', space=vmem, size = 0x20000, scoped, tag = 'scratch operand']
  #allocation3 [shape = 'f32[64,128]{1,0:T(8,128)}', space=vmem, size = 0x8000, scoped, tag = 'scratch operand']
  #allocation4 [shape = 'f32[1,1]{1,0:T(1,128)S(1)}', space=vmem, size = 0x200, scoped, tag = 'scoped memory for lstm_forward.1']
  %s0 = inlined_call_operand.vmem [shape: f32[64,18], index: 0, kind: input, shape index: {}]
  %s1 = inlined_call_operand.vmem [shape: f32[18,512], index: 1, kind: input, shape index: {}]
  %s2 = inlined_call_operand.vmem [shape: bf16[128,512], index: 2, kind: input, shape index: {}]
  %s3 = inlined_call_operand.vmem [shape: f32[1,512], index: 3, kind: input, shape index: {}]
  %s4 = inlined_call_operand.vmem [shape: f32[128,1], index: 4, kind: input, shape index: {}]
  %s5 = inlined_call_operand.<no memory space> [shape: f32[1,1], index: 5, kind: input, shape index: {}]
  %s6 = inlined_call_operand.vmem [shape: f32[64,1], index: 6, kind: output, shape index: {}]
  %s7 = sld [smem:[#allocation0]]
  $region34: #{lstm_forward.1} parent=0
    _
  %s9 = ssub.s32 1, %s7
  %s10 = scalar_select 0, %s9, %s7
  %v11 = vstv %s5
  %12 = vst [vmem:[#allocation4] sm:$0x1] %v11
  // Predicated region
  $region2: #{lstm_forward.1} parent=0 // pred_check
    _
  $region3: #{lstm_forward.1} parent=0 // pred_check_branch
    %14 = sbr.rel (0) target = $region5
  $region4: #{lstm_forward.1} parent=0 // pred_region
    _
  $region5: #{lstm_forward.1} parent=0 // pred_fallthru
    _
  // Predicated region
  $region6: #{lstm_forward.1} parent=0 // pred_check
    _
  $region7: #{lstm_forward.1} parent=0 // pred_check_branch
    %16 = sbr.rel (0) target = $region9
  $region8: #{lstm_forward.1} parent=0 // pred_region
    _
  $region9: #{lstm_forward.1} parent=0 // pred_fallthru
    _
  // Predicated region
  $region10: #{lstm_forward.1} parent=0 // pred_check
    _
  $region11: #{lstm_forward.1} parent=0 // pred_check_branch
    %18 = sbr.rel (0) target = $region13
  $region12: #{lstm_forward.1} parent=0 // pred_region
    _
  $region13: #{lstm_forward.1} parent=0 // pred_fallthru
    _
  // Predicated region
  $region14: #{lstm_forward.1} parent=0 // pred_check
    _
  $region15: #{lstm_forward.1} parent=0 // pred_check_branch
    %20 = sbr.rel (0) target = $region17
  $region16: #{lstm_forward.1} parent=0 // pred_region
    _
  $region17: #{lstm_forward.1} parent=0 // pred_fallthru
    _
  // Predicated region
  $region18: #{lstm_forward.1} parent=0 // pred_check
    _
  $region19: #{lstm_forward.1} parent=0 // pred_check_branch
    %22 = sbr.rel (0) target = $region21
  $region20: #{lstm_forward.1} parent=0 // pred_region
    _
  $region21: #{lstm_forward.1} parent=0 // pred_fallthru
    _
  // Predicated region
  $region22: #{lstm_forward.1} parent=0 // pred_check
    _
  $region23: #{lstm_forward.1} parent=0 // pred_check_branch
    %24 = sbr.rel (0) target = $region25
  $region24: #{lstm_forward.1} parent=0 // pred_region
    _
  $region25: #{lstm_forward.1} parent=0 // pred_fallthru
    _
  %v26 = vld [vmem:[%s0] sm:$0xff]
  %v27 = vld [vmem:[%s0 + $0x8] sm:$0xff]
  %v28 = vld [vmem:[%s0 + $0x10] sm:$0xff]
  %v29 = vld [vmem:[%s0 + $0x18] sm:$0xff]
  %v30 = vld [vmem:[%s0 + $0x20] sm:$0xff]
  %v31 = vld [vmem:[%s0 + $0x28] sm:$0xff]
  %v32 = vld [vmem:[%s0 + $0x30] sm:$0xff]
  %v33 = vld [vmem:[%s0 + $0x38] sm:$0xff]
  %v34 = vld [vmem:[%s1] sm:$0xff]
  %v35 = vld [vmem:[%s1 + $0x8] sm:$0xff]
  %v36 = vld [vmem:[%s1 + $0x10] sm:$0xff]
  %v37 = vld [vmem:[%s1 + $0x18] sm:$0xff]
  %v38 = vld [vmem:[%s1 + $0x20] sm:$0xff]
  %v39 = vld [vmem:[%s1 + $0x28] sm:$0xff]
  %v40 = vld [vmem:[%s1 + $0x30] sm:$0xff]
  %v41 = vld [vmem:[%s1 + $0x38] sm:$0xff]
  %v42 = vld [vmem:[%s1 + $0x40] sm:$0x3]
  %v43 = vld [vmem:[%s1 + $0x48] sm:$0x3]
  %v44 = vld [vmem:[%s1 + $0x50] sm:$0x3]
  %v45 = vld [vmem:[%s1 + $0x58] sm:$0x3]
  %v46 = vld [vmem:[%s3] sm:$0xf]
  %v48 = vlaneseq
  %v49 = vshrl.u32 %v48, 7
  %v50 = vsub.s32 0, %v49
  %v51 = vrot.slane %v46, %v50
  %v52 = vlaneseq
  %v53 = vshrl.u32 %v52, 7
  %v54 = vsub.s32 1, %v53
  %v55 = vrot.slane %v46, %v54
  %v56 = vlaneseq
  %v57 = vshrl.u32 %v56, 7
  %v58 = vsub.s32 2, %v57
  %v59 = vrot.slane %v46, %v58
  %v60 = vlaneseq
  %v61 = vshrl.u32 %v60, 7
  %v62 = vsub.s32 3, %v61
  %v63 = vrot.slane %v46, %v62
  %vm68 = vcmask 146432
  %v70 = vsel %vm68, %v26, 0
  %v73 = vsel %vm68, %v27, 0
  %v76 = vsel %vm68, %v28, 0
  %v79 = vsel %vm68, %v29, 0
  %v82 = vsel %vm68, %v30, 0
  %v85 = vsel %vm68, %v31, 0
  %v88 = vsel %vm68, %v32, 0
  %v91 = vsel %vm68, %v33, 0
  %vm93 = vcmask 1041408
  %v95 = vsel %vm93, %v42, 0
  %v98 = vsel %vm93, %v43, 0
  %v101 = vsel %vm93, %v44, 0
  %v104 = vsel %vm93, %v45, 0
  %106 = vmatprep.subr.mxu0 0.0
  %107 = vmatpush1.msra.mxu0 0.0
  %108 = vmatprep.subr.mxu0 0.0
  %109 = vmatpush1.msra.mxu0 0.0
  %110 = vmatprep.subr.mxu0 0.0
  %111 = vmatpush1.msra.mxu0 0.0
  %112 = vmatprep.subr.mxu0 0.0
  %113 = vmatpush1.msra.mxu0 0.0
  %114 = vmatprep.subr.mxu0 0.0
  %115 = vmatpush1.msra.mxu0 0.0
  %116 = vmatprep.subr.mxu0 0.0
  %117 = vmatpush1.msra.mxu0 0.0
  %118 = vmatprep.subr.mxu0 0.0
  %119 = vmatpush1.msra.mxu0 0.0
  %120 = vmatprep.subr.mxu0 0.0
  %121 = vmatpush1.msra.mxu0 0.0
  %122 = vmatprep.subr.mxu0 0.0
  %123 = vmatpush1.msra.mxu0 0.0
  %124 = vmatprep.subr.mxu0 0.0
  %125 = vmatpush1.msra.mxu0 0.0
  %126 = vmatprep.subr.mxu0 0.0
  %127 = vmatpush1.msra.mxu0 0.0
  %128 = vmatprep.subr.mxu0 0.0
  %129 = vmatpush1.msra.mxu0 0.0
  %130 = vmatprep.subr.mxu0 0.0
  %131 = vmatpush1.msra.mxu0 0.0
  %132 = vmatprep.subr.mxu0 %v98
  %133 = vmatpush1.msra.mxu0 %v95
  %134 = vmatprep.subr.mxu0 %v39
  %135 = vmatpush1.msra.mxu0 %v38
  %136 = vmatprep.subr.mxu0 %v35
  %137 = vmatpush1.msra.mxu0 %v34
  %138 = vmatprep.subr.mxu0 0.0
  %139 = vmatpush2.msra.mxu0 0.0
  %140 = vmatprep.subr.mxu0 0.0
  %141 = vmatpush2.msra.mxu0 0.0
  %142 = vmatprep.subr.mxu0 0.0
  %143 = vmatpush2.msra.mxu0 0.0
  %144 = vmatprep.subr.mxu0 0.0
  %145 = vmatpush2.msra.mxu0 0.0
  %146 = vmatprep.subr.mxu0 0.0
  %147 = vmatpush2.msra.mxu0 0.0
  %148 = vmatprep.subr.mxu0 0.0
  %149 = vmatpush2.msra.mxu0 0.0
  %150 = vmatprep.subr.mxu0 0.0
  %151 = vmatpush2.msra.mxu0 0.0
  %152 = vmatprep.subr.mxu0 0.0
  %153 = vmatpush2.msra.mxu0 0.0
  %154 = vmatprep.subr.mxu0 0.0
  %155 = vmatpush2.msra.mxu0 0.0
  %156 = vmatprep.subr.mxu0 0.0
  %157 = vmatpush2.msra.mxu0 0.0
  %158 = vmatprep.subr.mxu0 0.0
  %159 = vmatpush2.msra.mxu0 0.0
  %160 = vmatprep.subr.mxu0 0.0
  %161 = vmatpush2.msra.mxu0 0.0
  %162 = vmatprep.subr.mxu0 0.0
  %163 = vmatpush2.msra.mxu0 0.0
  %164 = vmatprep.subr.mxu0 0.0
  %165 = vmatpush2.msra.mxu0 0.0
  %166 = vmatprep.subr.mxu0 0.0
  %167 = vmatpush2.msra.mxu0 0.0
  %168 = vmatprep.subr.mxu0 0.0
  %169 = vmatpush2.msra.mxu0 0.0
  %170 = vmatprep.mubr.f32.mxu0 0.0
  %171 = vmatmul.mubr.f32.gmra.mxu0 %v70
  %v172 = vpop.f32.mrf.mxu0
  %v173 = vadd.f32 %v51, %v172
  %v174 = vpop.f32.mrf.mxu0
  %v175 = vadd.f32 %v55, %v174
  %176 = vmatprep.mubr.f32.mxu0 0.0
  %177 = vmatmul.mubr.f32.gmra.mxu0 %v73
  %v178 = vpop.f32.mrf.mxu0
  %v179 = vadd.f32 %v51, %v178
  %v180 = vpop.f32.mrf.mxu0
  %v181 = vadd.f32 %v55, %v180
  %182 = vmatprep.mubr.f32.mxu0 0.0
  %183 = vmatmul.mubr.f32.gmra.mxu0 %v76
  %v184 = vpop.f32.mrf.mxu0
  %v185 = vadd.f32 %v51, %v184
  %v186 = vpop.f32.mrf.mxu0
  %v187 = vadd.f32 %v55, %v186
  %188 = vmatprep.mubr.f32.mxu0 0.0
  %189 = vmatmul.mubr.f32.gmra.mxu0 %v79
  %v190 = vpop.f32.mrf.mxu0
  %v191 = vadd.f32 %v51, %v190
  %v192 = vpop.f32.mrf.mxu0
  %v193 = vadd.f32 %v55, %v192
  %194 = vmatprep.mubr.f32.mxu0 0.0
  %195 = vmatmul.mubr.f32.gmra.mxu0 %v82
  %v196 = vpop.f32.mrf.mxu0
  %v197 = vadd.f32 %v51, %v196
  %v198 = vpop.f32.mrf.mxu0
  %v199 = vadd.f32 %v55, %v198
  %200 = vmatprep.mubr.f32.mxu0 0.0
  %201 = vmatmul.mubr.f32.gmra.mxu0 %v85
  %v202 = vpop.f32.mrf.mxu0
  %v203 = vadd.f32 %v51, %v202
  %v204 = vpop.f32.mrf.mxu0
  %v205 = vadd.f32 %v55, %v204
  %206 = vmatprep.mubr.f32.mxu0 0.0
  %207 = vmatmul.mubr.f32.gmra.mxu0 %v88
  %v208 = vpop.f32.mrf.mxu0
  %v209 = vadd.f32 %v51, %v208
  %v210 = vpop.f32.mrf.mxu0
  %v211 = vadd.f32 %v55, %v210
  %212 = vmatprep.mubr.f32.mxu0 0.0
  %213 = vmatmul.mubr.f32.gmra.mxu0 %v91
  %v214 = vpop.f32.mrf.mxu0
  %v215 = vadd.f32 %v51, %v214
  %v216 = vpop.f32.mrf.mxu0
  %v217 = vadd.f32 %v55, %v216
  %218 = vdwg.mxu0
  %219 = vmatprep.subr.mxu0 0.0
  %220 = vmatpush1.msra.mxu0 0.0
  %221 = vmatprep.subr.mxu0 0.0
  %222 = vmatpush1.msra.mxu0 0.0
  %223 = vmatprep.subr.mxu0 0.0
  %224 = vmatpush1.msra.mxu0 0.0
  %225 = vmatprep.subr.mxu0 0.0
  %226 = vmatpush1.msra.mxu0 0.0
  %227 = vmatprep.subr.mxu0 0.0
  %228 = vmatpush1.msra.mxu0 0.0
  %229 = vmatprep.subr.mxu0 0.0
  %230 = vmatpush1.msra.mxu0 0.0
  %231 = vmatprep.subr.mxu0 0.0
  %232 = vmatpush1.msra.mxu0 0.0
  %233 = vmatprep.subr.mxu0 0.0
  %234 = vmatpush1.msra.mxu0 0.0
  %235 = vmatprep.subr.mxu0 0.0
  %236 = vmatpush1.msra.mxu0 0.0
  %237 = vmatprep.subr.mxu0 0.0
  %238 = vmatpush1.msra.mxu0 0.0
  %239 = vmatprep.subr.mxu0 0.0
  %240 = vmatpush1.msra.mxu0 0.0
  %241 = vmatprep.subr.mxu0 0.0
  %242 = vmatpush1.msra.mxu0 0.0
  %243 = vmatprep.subr.mxu0 0.0
  %244 = vmatpush1.msra.mxu0 0.0
  %245 = vmatprep.subr.mxu0 %v104
  %246 = vmatpush1.msra.mxu0 %v101
  %247 = vmatprep.subr.mxu0 %v41
  %248 = vmatpush1.msra.mxu0 %v40
  %249 = vmatprep.subr.mxu0 %v37
  %250 = vmatpush1.msra.mxu0 %v36
  %251 = vmatprep.subr.mxu0 0.0
  %252 = vmatpush2.msra.mxu0 0.0
  %253 = vmatprep.subr.mxu0 0.0
  %254 = vmatpush2.msra.mxu0 0.0
  %255 = vmatprep.subr.mxu0 0.0
  %256 = vmatpush2.msra.mxu0 0.0
  %257 = vmatprep.subr.mxu0 0.0
  %258 = vmatpush2.msra.mxu0 0.0
  %259 = vmatprep.subr.mxu0 0.0
  %260 = vmatpush2.msra.mxu0 0.0
  %261 = vmatprep.subr.mxu0 0.0
  %262 = vmatpush2.msra.mxu0 0.0
  %263 = vmatprep.subr.mxu0 0.0
  %264 = vmatpush2.msra.mxu0 0.0
  %265 = vmatprep.subr.mxu0 0.0
  %266 = vmatpush2.msra.mxu0 0.0
  %267 = vmatprep.subr.mxu0 0.0
  %268 = vmatpush2.msra.mxu0 0.0
  %269 = vmatprep.subr.mxu0 0.0
  %270 = vmatpush2.msra.mxu0 0.0
  %271 = vmatprep.subr.mxu0 0.0
  %272 = vmatpush2.msra.mxu0 0.0
  %273 = vmatprep.subr.mxu0 0.0
  %274 = vmatpush2.msra.mxu0 0.0
  %275 = vmatprep.subr.mxu0 0.0
  %276 = vmatpush2.msra.mxu0 0.0
  %277 = vmatprep.subr.mxu0 0.0
  %278 = vmatpush2.msra.mxu0 0.0
  %279 = vmatprep.subr.mxu0 0.0
  %280 = vmatpush2.msra.mxu0 0.0
  %281 = vmatprep.subr.mxu0 0.0
  %282 = vmatpush2.msra.mxu0 0.0
  %283 = vmatprep.mubr.f32.mxu0 0.0
  %284 = vmatmul.mubr.f32.gmra.mxu0 %v70
  %v285 = vpop.f32.mrf.mxu0
  %v286 = vadd.f32 %v59, %v285
  %v287 = vpop.f32.mrf.mxu0
  %v288 = vadd.f32 %v63, %v287
  %289 = vmatprep.mubr.f32.mxu0 0.0
  %290 = vmatmul.mubr.f32.gmra.mxu0 %v73
  %v291 = vpop.f32.mrf.mxu0
  %v292 = vadd.f32 %v59, %v291
  %v293 = vpop.f32.mrf.mxu0
  %v294 = vadd.f32 %v63, %v293
  %295 = vmatprep.mubr.f32.mxu0 0.0
  %296 = vmatmul.mubr.f32.gmra.mxu0 %v76
  %v297 = vpop.f32.mrf.mxu0
  %v298 = vadd.f32 %v59, %v297
  %v299 = vpop.f32.mrf.mxu0
  %v300 = vadd.f32 %v63, %v299
  %301 = vmatprep.mubr.f32.mxu0 0.0
  %302 = vmatmul.mubr.f32.gmra.mxu0 %v79
  %v303 = vpop.f32.mrf.mxu0
  %v304 = vadd.f32 %v59, %v303
  %v305 = vpop.f32.mrf.mxu0
  %v306 = vadd.f32 %v63, %v305
  %307 = vmatprep.mubr.f32.mxu0 0.0
  %308 = vmatmul.mubr.f32.gmra.mxu0 %v82
  %v309 = vpop.f32.mrf.mxu0
  %v310 = vadd.f32 %v59, %v309
  %v311 = vpop.f32.mrf.mxu0
  %v312 = vadd.f32 %v63, %v311
  %313 = vmatprep.mubr.f32.mxu0 0.0
  %314 = vmatmul.mubr.f32.gmra.mxu0 %v85
  %v315 = vpop.f32.mrf.mxu0
  %v316 = vadd.f32 %v59, %v315
  %v317 = vpop.f32.mrf.mxu0
  %v318 = vadd.f32 %v63, %v317
  %319 = vmatprep.mubr.f32.mxu0 0.0
  %320 = vmatmul.mubr.f32.gmra.mxu0 %v88
  %v321 = vpop.f32.mrf.mxu0
  %v322 = vadd.f32 %v59, %v321
  %v323 = vpop.f32.mrf.mxu0
  %v324 = vadd.f32 %v63, %v323
  %325 = vmatprep.mubr.f32.mxu0 0.0
  %326 = vmatmul.mubr.f32.gmra.mxu0 %v91
  %v327 = vpop.f32.mrf.mxu0
  %v328 = vadd.f32 %v59, %v327
  %v329 = vpop.f32.mrf.mxu0
  %v330 = vadd.f32 %v63, %v329
  %331 = vdwg.mxu0
  %332 = vst [vmem:[#allocation2] sm:$0xff] %v173
  %333 = vst [vmem:[#allocation2 + $0x8] sm:$0xff] %v175
  %334 = vst [vmem:[#allocation2 + $0x10] sm:$0xff] %v286
  %335 = vst [vmem:[#allocation2 + $0x18] sm:$0xff] %v288
  %336 = vst [vmem:[#allocation2 + $0x20] sm:$0xff] %v179
  %337 = vst [vmem:[#allocation2 + $0x28] sm:$0xff] %v181
  %338 = vst [vmem:[#allocation2 + $0x30] sm:$0xff] %v292
  %339 = vst [vmem:[#allocation2 + $0x38] sm:$0xff] %v294
  %340 = vst [vmem:[#allocation2 + $0x40] sm:$0xff] %v185
  %341 = vst [vmem:[#allocation2 + $0x48] sm:$0xff] %v187
  %342 = vst [vmem:[#allocation2 + $0x50] sm:$0xff] %v298
  %343 = vst [vmem:[#allocation2 + $0x58] sm:$0xff] %v300
  %344 = vst [vmem:[#allocation2 + $0x60] sm:$0xff] %v191
  %345 = vst [vmem:[#allocation2 + $0x68] sm:$0xff] %v193
  %346 = vst [vmem:[#allocation2 + $0x70] sm:$0xff] %v304
  %347 = vst [vmem:[#allocation2 + $0x78] sm:$0xff] %v306
  %348 = vst [vmem:[#allocation2 + $0x80] sm:$0xff] %v197
  %349 = vst [vmem:[#allocation2 + $0x88] sm:$0xff] %v199
  %350 = vst [vmem:[#allocation2 + $0x90] sm:$0xff] %v310
  %351 = vst [vmem:[#allocation2 + $0x98] sm:$0xff] %v312
  %352 = vst [vmem:[#allocation2 + $0xa0] sm:$0xff] %v203
  %353 = vst [vmem:[#allocation2 + $0xa8] sm:$0xff] %v205
  %354 = vst [vmem:[#allocation2 + $0xb0] sm:$0xff] %v316
  %355 = vst [vmem:[#allocation2 + $0xb8] sm:$0xff] %v318
  %356 = vst [vmem:[#allocation2 + $0xc0] sm:$0xff] %v209
  %357 = vst [vmem:[#allocation2 + $0xc8] sm:$0xff] %v211
  %358 = vst [vmem:[#allocation2 + $0xd0] sm:$0xff] %v322
  %359 = vst [vmem:[#allocation2 + $0xd8] sm:$0xff] %v324
  %360 = vst [vmem:[#allocation2 + $0xe0] sm:$0xff] %v215
  %361 = vst [vmem:[#allocation2 + $0xe8] sm:$0xff] %v217
  %362 = vst [vmem:[#allocation2 + $0xf0] sm:$0xff] %v328
  %363 = vst [vmem:[#allocation2 + $0xf8] sm:$0xff] %v330
  %v364 = vld [vmem:[%s2] sm:$0xff]
  %v365 = vld [vmem:[%s2 + $0x8] sm:$0xff]
  %v366 = vld [vmem:[%s2 + $0x10] sm:$0xff]
  %v367 = vld [vmem:[%s2 + $0x18] sm:$0xff]
  %v368 = vld [vmem:[%s2 + $0x20] sm:$0xff]
  %v369 = vld [vmem:[%s2 + $0x28] sm:$0xff]
  %v370 = vld [vmem:[%s2 + $0x30] sm:$0xff]
  %v371 = vld [vmem:[%s2 + $0x38] sm:$0xff]
  %v372 = vld [vmem:[%s2 + $0x40] sm:$0xff]
  %v373 = vld [vmem:[%s2 + $0x48] sm:$0xff]
  %v374 = vld [vmem:[%s2 + $0x50] sm:$0xff]
  %v375 = vld [vmem:[%s2 + $0x58] sm:$0xff]
  %v376 = vld [vmem:[%s2 + $0x60] sm:$0xff]
  %v377 = vld [vmem:[%s2 + $0x68] sm:$0xff]
  %v378 = vld [vmem:[%s2 + $0x70] sm:$0xff]
  %v379 = vld [vmem:[%s2 + $0x78] sm:$0xff]
  %v380 = vld [vmem:[%s2 + $0x80] sm:$0xff]
  %v381 = vld [vmem:[%s2 + $0x88] sm:$0xff]
  %v382 = vld [vmem:[%s2 + $0x90] sm:$0xff]
  %v383 = vld [vmem:[%s2 + $0x98] sm:$0xff]
  %v384 = vld [vmem:[%s2 + $0xa0] sm:$0xff]
  %v385 = vld [vmem:[%s2 + $0xa8] sm:$0xff]
  %v386 = vld [vmem:[%s2 + $0xb0] sm:$0xff]
  %v387 = vld [vmem:[%s2 + $0xb8] sm:$0xff]
  %v388 = vld [vmem:[%s2 + $0xc0] sm:$0xff]
  %v389 = vld [vmem:[%s2 + $0xc8] sm:$0xff]
  %v390 = vld [vmem:[%s2 + $0xd0] sm:$0xff]
  %v391 = vld [vmem:[%s2 + $0xd8] sm:$0xff]
  %v392 = vld [vmem:[%s2 + $0xe0] sm:$0xff]
  %v393 = vld [vmem:[%s2 + $0xe8] sm:$0xff]
  %v394 = vld [vmem:[%s2 + $0xf0] sm:$0xff]
  %v395 = vld [vmem:[%s2 + $0xf8] sm:$0xff]
  %v396 = vld [vmem:[#allocation2] sm:$0xff]
  %v397 = vld [vmem:[#allocation2 + $0x8] sm:$0xff]
  %v398 = vld [vmem:[#allocation2 + $0x10] sm:$0xff]
  %v399 = vld [vmem:[#allocation2 + $0x18] sm:$0xff]
  %v432 = vunpack.c.l.b16 %v364
  %v433 = vunpack.c.h.b16 %v364
  %v434 = vunpack.c.l.b16 %v365
  %v435 = vunpack.c.h.b16 %v365
  %v436 = vunpack.c.l.b16 %v366
  %v437 = vunpack.c.h.b16 %v366
  %v438 = vunpack.c.l.b16 %v367
  %v439 = vunpack.c.h.b16 %v367
  %v440 = vunpack.c.l.b16 %v368
  %v441 = vunpack.c.h.b16 %v368
  %v442 = vunpack.c.l.b16 %v369
  %v443 = vunpack.c.h.b16 %v369
  %v444 = vunpack.c.l.b16 %v370
  %v445 = vunpack.c.h.b16 %v370
  %v446 = vunpack.c.l.b16 %v371
  %v447 = vunpack.c.h.b16 %v371
  %v448 = vunpack.c.l.b16 %v372
  %v449 = vunpack.c.h.b16 %v372
  %v450 = vunpack.c.l.b16 %v373
  %v451 = vunpack.c.h.b16 %v373
  %v452 = vunpack.c.l.b16 %v374
  %v453 = vunpack.c.h.b16 %v374
  %v454 = vunpack.c.l.b16 %v375
  %v455 = vunpack.c.h.b16 %v375
  %v456 = vunpack.c.l.b16 %v376
  %v457 = vunpack.c.h.b16 %v376
  %v458 = vunpack.c.l.b16 %v377
  %v459 = vunpack.c.h.b16 %v377
  %v460 = vunpack.c.l.b16 %v378
  %v461 = vunpack.c.h.b16 %v378
  %v462 = vunpack.c.l.b16 %v379
  %v463 = vunpack.c.h.b16 %v379
  %v464 = vunpack.c.l.b16 %v380
  %v465 = vunpack.c.h.b16 %v380
  %v466 = vunpack.c.l.b16 %v381
  %v467 = vunpack.c.h.b16 %v381
  %v468 = vunpack.c.l.b16 %v382
  %v469 = vunpack.c.h.b16 %v382
  %v470 = vunpack.c.l.b16 %v383
  %v471 = vunpack.c.h.b16 %v383
  %v472 = vunpack.c.l.b16 %v384
  %v473 = vunpack.c.h.b16 %v384
  %v474 = vunpack.c.l.b16 %v385
  %v475 = vunpack.c.h.b16 %v385
  %v476 = vunpack.c.l.b16 %v386
  %v477 = vunpack.c.h.b16 %v386
  %v478 = vunpack.c.l.b16 %v387
  %v479 = vunpack.c.h.b16 %v387
  %v480 = vunpack.c.l.b16 %v388
  %v481 = vunpack.c.h.b16 %v388
  %v482 = vunpack.c.l.b16 %v389
  %v483 = vunpack.c.h.b16 %v389
  %v484 = vunpack.c.l.b16 %v390
  %v485 = vunpack.c.h.b16 %v390
  %v486 = vunpack.c.l.b16 %v391
  %v487 = vunpack.c.h.b16 %v391
  %v488 = vunpack.c.l.b16 %v392
  %v489 = vunpack.c.h.b16 %v392
  %v490 = vunpack.c.l.b16 %v393
  %v491 = vunpack.c.h.b16 %v393
  %v492 = vunpack.c.l.b16 %v394
  %v493 = vunpack.c.h.b16 %v394
  %v494 = vunpack.c.l.b16 %v395
  %v495 = vunpack.c.h.b16 %v395
  %v496 = vpack.c.b16 %v436, %v432
  %v497 = vpack.c.b16 %v437, %v433
  %v498 = vpack.c.b16 %v438, %v434
  %v499 = vpack.c.b16 %v439, %v435
  %v500 = vpack.c.b16 %v444, %v440
  %v501 = vpack.c.b16 %v445, %v441
  %v502 = vpack.c.b16 %v446, %v442
  %v503 = vpack.c.b16 %v447, %v443
  %v504 = vpack.c.b16 %v452, %v448
  %v505 = vpack.c.b16 %v453, %v449
  %v506 = vpack.c.b16 %v454, %v450
  %v507 = vpack.c.b16 %v455, %v451
  %v508 = vpack.c.b16 %v460, %v456
  %v509 = vpack.c.b16 %v461, %v457
  %v510 = vpack.c.b16 %v462, %v458
  %v511 = vpack.c.b16 %v463, %v459
  %v512 = vpack.c.b16 %v468, %v464
  %v513 = vpack.c.b16 %v469, %v465
  %v514 = vpack.c.b16 %v470, %v466
  %v515 = vpack.c.b16 %v471, %v467
  %v516 = vpack.c.b16 %v476, %v472
  %v517 = vpack.c.b16 %v477, %v473
  %v518 = vpack.c.b16 %v478, %v474
  %v519 = vpack.c.b16 %v479, %v475
  %v520 = vpack.c.b16 %v484, %v480
  %v521 = vpack.c.b16 %v485, %v481
  %v522 = vpack.c.b16 %v486, %v482
  %v523 = vpack.c.b16 %v487, %v483
  %v524 = vpack.c.b16 %v492, %v488
  %v525 = vpack.c.b16 %v493, %v489
  %v526 = vpack.c.b16 %v494, %v490
  %v527 = vpack.c.b16 %v495, %v491
  %560 = vmatprep.subr.bf16.mxu0 %v525
  %561 = vmatpush1.bf16.msra.mxu0 %v524
  %562 = vmatprep.subr.bf16.mxu0 %v521
  %563 = vmatpush1.bf16.msra.mxu0 %v520
  %564 = vmatprep.subr.bf16.mxu0 %v517
  %565 = vmatpush1.bf16.msra.mxu0 %v516
  %566 = vmatprep.subr.bf16.mxu0 %v513
  %567 = vmatpush1.bf16.msra.mxu0 %v512
  %568 = vmatprep.subr.bf16.mxu0 %v509
  %569 = vmatpush1.bf16.msra.mxu0 %v508
  %570 = vmatprep.subr.bf16.mxu0 %v505
  %571 = vmatpush1.bf16.msra.mxu0 %v504
  %572 = vmatprep.subr.bf16.mxu0 %v501
  %573 = vmatpush1.bf16.msra.mxu0 %v500
  %574 = vmatprep.subr.bf16.mxu0 %v497
  %575 = vmatpush1.bf16.msra.mxu0 %v496
  %576 = vmatprep.subr.bf16.mxu0 0
  %577 = vmatpush2.bf16.msra.mxu0 0
  %578 = vmatprep.subr.bf16.mxu0 0
  %579 = vmatpush2.bf16.msra.mxu0 0
  %580 = vmatprep.subr.bf16.mxu0 0
  %581 = vmatpush2.bf16.msra.mxu0 0
  %582 = vmatprep.subr.bf16.mxu0 0
  %583 = vmatpush2.bf16.msra.mxu0 0
  %584 = vmatprep.subr.bf16.mxu0 0
  %585 = vmatpush2.bf16.msra.mxu0 0
  %586 = vmatprep.subr.bf16.mxu0 0
  %587 = vmatpush2.bf16.msra.mxu0 0
  %588 = vmatprep.subr.bf16.mxu0 0
  %589 = vmatpush2.bf16.msra.mxu0 0
  %590 = vmatprep.subr.bf16.mxu0 0
  %591 = vmatpush2.bf16.msra.mxu0 0
  %592 = vmatprep.mubr.bf16.mxu0 0
  %593 = vmatmul.mubr.bf16.gmra.mxu0 0
  %v594 = vpop.f32.mrf.mxu0
  %v595 = vadd.f32 0.0, %v594
  %v596 = vpop.f32.mrf.mxu0
  %v597 = vadd.f32 0.0, %v596
  %v598 = vpop.f32.mrf.mxu0
  %v599 = vpop.f32.mrf.mxu0
  %600 = vdwg.mxu0
  %601 = vmatprep.subr.bf16.mxu0 %v527
  %602 = vmatpush1.bf16.msra.mxu0 %v526
  %603 = vmatprep.subr.bf16.mxu0 %v523
  %604 = vmatpush1.bf16.msra.mxu0 %v522
  %605 = vmatprep.subr.bf16.mxu0 %v519
  %606 = vmatpush1.bf16.msra.mxu0 %v518
  %607 = vmatprep.subr.bf16.mxu0 %v515
  %608 = vmatpush1.bf16.msra.mxu0 %v514
  %609 = vmatprep.subr.bf16.mxu0 %v511
  %610 = vmatpush1.bf16.msra.mxu0 %v510
  %611 = vmatprep.subr.bf16.mxu0 %v507
  %612 = vmatpush1.bf16.msra.mxu0 %v506
  %613 = vmatprep.subr.bf16.mxu0 %v503
  %614 = vmatpush1.bf16.msra.mxu0 %v502
  %615 = vmatprep.subr.bf16.mxu0 %v499
  %616 = vmatpush1.bf16.msra.mxu0 %v498
  %617 = vmatprep.subr.bf16.mxu0 0
  %618 = vmatpush2.bf16.msra.mxu0 0
  %619 = vmatprep.subr.bf16.mxu0 0
  %620 = vmatpush2.bf16.msra.mxu0 0
  %621 = vmatprep.subr.bf16.mxu0 0
  %622 = vmatpush2.bf16.msra.mxu0 0
  %623 = vmatprep.subr.bf16.mxu0 0
  %624 = vmatpush2.bf16.msra.mxu0 0
  %625 = vmatprep.subr.bf16.mxu0 0
  %626 = vmatpush2.bf16.msra.mxu0 0
  %627 = vmatprep.subr.bf16.mxu0 0
  %628 = vmatpush2.bf16.msra.mxu0 0
  %629 = vmatprep.subr.bf16.mxu0 0
  %630 = vmatpush2.bf16.msra.mxu0 0
  %631 = vmatprep.subr.bf16.mxu0 0
  %632 = vmatpush2.bf16.msra.mxu0 0
  %633 = vmatprep.mubr.bf16.mxu0 0
  %634 = vmatmul.mubr.bf16.gmra.mxu0 0
  %v635 = vpop.f32.mrf.mxu0
  %v636 = vadd.f32 0.0, %v635
  %v637 = vpop.f32.mrf.mxu0
  %v638 = vadd.f32 0.0, %v637
  %v639 = vpop.f32.mrf.mxu0
  %v640 = vpop.f32.mrf.mxu0
  %641 = vdwg.mxu0
  %v642 = vadd.f32 %v396, %v595
  %v643 = vadd.f32 %v397, %v597
  %v644 = vadd.f32 %v398, %v636
  %v645 = vadd.f32 %v399, %v638
  %v646 = vmul.f32 %v642, 0.5
  %v647 = vmul.f32 %v643, 0.5
  %v648 = vmul.f32 %v644, 0.5
  %v649 = vtanh.pop %v646
  %v650 = vtanh.pop %v647
  %v651 = vtanh.pop %v648
  %v652 = vadd.f32 %v649, 1.0
  %v653 = vadd.f32 %v650, 1.0
  %v654 = vadd.f32 %v651, 1.0
  %v655 = vmul.f32 %v652, 0.5
  %v656 = vmul.f32 %v653, 0.5
  %v657 = vmul.f32 %v654, 0.5
  %v658 = vtanh.pop %v645
  %v659 = vmul.f32 %v656, 0.0
  %v660 = vmul.f32 %v655, %v658
  %v661 = vadd.f32 %v659, %v660
  %v662 = vtanh.pop %v661
  %v663 = vmul.f32 %v657, %v662
  %664 = vst [vmem:[#allocation3] sm:$0xff] %v663
  %v665 = vld [vmem:[#allocation2 + $0x20] sm:$0xff]
  %v666 = vld [vmem:[#allocation2 + $0x28] sm:$0xff]
  %v667 = vld [vmem:[#allocation2 + $0x30] sm:$0xff]
  %v668 = vld [vmem:[#allocation2 + $0x38] sm:$0xff]
  %v669 = vpack.c.bf16 %v663, %v663
  %670 = vmatprep.subr.bf16.mxu0 %v525
  %671 = vmatpush1.bf16.msra.mxu0 %v524
  %672 = vmatprep.subr.bf16.mxu0 %v521
  %673 = vmatpush1.bf16.msra.mxu0 %v520
  %674 = vmatprep.subr.bf16.mxu0 %v517
  %675 = vmatpush1.bf16.msra.mxu0 %v516
  %676 = vmatprep.subr.bf16.mxu0 %v513
  %677 = vmatpush1.bf16.msra.mxu0 %v512
  %678 = vmatprep.subr.bf16.mxu0 %v509
  %679 = vmatpush1.bf16.msra.mxu0 %v508
  %680 = vmatprep.subr.bf16.mxu0 %v505
  %681 = vmatpush1.bf16.msra.mxu0 %v504
  %682 = vmatprep.subr.bf16.mxu0 %v501
  %683 = vmatpush1.bf16.msra.mxu0 %v500
  %684 = vmatprep.subr.bf16.mxu0 %v497
  %685 = vmatpush1.bf16.msra.mxu0 %v496
  %686 = vmatprep.subr.bf16.mxu0 0
  %687 = vmatpush2.bf16.msra.mxu0 0
  %688 = vmatprep.subr.bf16.mxu0 0
  %689 = vmatpush2.bf16.msra.mxu0 0
  %690 = vmatprep.subr.bf16.mxu0 0
  %691 = vmatpush2.bf16.msra.mxu0 0
  %692 = vmatprep.subr.bf16.mxu0 0
  %693 = vmatpush2.bf16.msra.mxu0 0
  %694 = vmatprep.subr.bf16.mxu0 0
  %695 = vmatpush2.bf16.msra.mxu0 0
  %696 = vmatprep.subr.bf16.mxu0 0
  %697 = vmatpush2.bf16.msra.mxu0 0
  %698 = vmatprep.subr.bf16.mxu0 0
  %699 = vmatpush2.bf16.msra.mxu0 0
  %700 = vmatprep.subr.bf16.mxu0 0
  %701 = vmatpush2.bf16.msra.mxu0 0
  %702 = vmatprep.mubr.bf16.mxu0 0
  %703 = vmatmul.mubr.bf16.gmra.mxu0 %v669
  %v704 = vpop.f32.mrf.mxu0
  %v705 = vadd.f32 0.0, %v704
  %v706 = vpop.f32.mrf.mxu0
  %v707 = vadd.f32 0.0, %v706
  %v708 = vpop.f32.mrf.mxu0
  %v709 = vpop.f32.mrf.mxu0
  %710 = vdwg.mxu0
  %711 = vmatprep.subr.bf16.mxu0 %v527
  %712 = vmatpush1.bf16.msra.mxu0 %v526
  %713 = vmatprep.subr.bf16.mxu0 %v523
  %714 = vmatpush1.bf16.msra.mxu0 %v522
  %715 = vmatprep.subr.bf16.mxu0 %v519
  %716 = vmatpush1.bf16.msra.mxu0 %v518
  %717 = vmatprep.subr.bf16.mxu0 %v515
  %718 = vmatpush1.bf16.msra.mxu0 %v514
  %719 = vmatprep.subr.bf16.mxu0 %v511
  %720 = vmatpush1.bf16.msra.mxu0 %v510
  %721 = vmatprep.subr.bf16.mxu0 %v507
  %722 = vmatpush1.bf16.msra.mxu0 %v506
  %723 = vmatprep.subr.bf16.mxu0 %v503
  %724 = vmatpush1.bf16.msra.mxu0 %v502
  %725 = vmatprep.subr.bf16.mxu0 %v499
  %726 = vmatpush1.bf16.msra.mxu0 %v498
  %727 = vmatprep.subr.bf16.mxu0 0
  %728 = vmatpush2.bf16.msra.mxu0 0
  %729 = vmatprep.subr.bf16.mxu0 0
  %730 = vmatpush2.bf16.msra.mxu0 0
  %731 = vmatprep.subr.bf16.mxu0 0
  %732 = vmatpush2.bf16.msra.mxu0 0
  %733 = vmatprep.subr.bf16.mxu0 0
  %734 = vmatpush2.bf16.msra.mxu0 0
  %735 = vmatprep.subr.bf16.mxu0 0
  %736 = vmatpush2.bf16.msra.mxu0 0
  %737 = vmatprep.subr.bf16.mxu0 0
  %738 = vmatpush2.bf16.msra.mxu0 0
  %739 = vmatprep.subr.bf16.mxu0 0
  %740 = vmatpush2.bf16.msra.mxu0 0
  %741 = vmatprep.subr.bf16.mxu0 0
  %742 = vmatpush2.bf16.msra.mxu0 0
  %743 = vmatprep.mubr.bf16.mxu0 0
  %744 = vmatmul.mubr.bf16.gmra.mxu0 %v669
  %v745 = vpop.f32.mrf.mxu0
  %v746 = vadd.f32 0.0, %v745
  %v747 = vpop.f32.mrf.mxu0
  %v748 = vadd.f32 0.0, %v747
  %v749 = vpop.f32.mrf.mxu0
  %v750 = vpop.f32.mrf.mxu0
  %751 = vdwg.mxu0
  %v752 = vadd.f32 %v665, %v705
  %v753 = vadd.f32 %v666, %v707
  %v754 = vadd.f32 %v667, %v746
  %v755 = vadd.f32 %v668, %v748
  %v756 = vmul.f32 %v752, 0.5
  %v757 = vmul.f32 %v753, 0.5
  %v758 = vmul.f32 %v754, 0.5
  %v759 = vtanh.pop %v756
  %v760 = vtanh.pop %v757
  %v761 = vtanh.pop %v758
  %v762 = vadd.f32 %v759, 1.0
  %v763 = vadd.f32 %v760, 1.0
  %v764 = vadd.f32 %v761, 1.0
  %v765 = vmul.f32 %v762, 0.5
  %v766 = vmul.f32 %v763, 0.5
  %v767 = vmul.f32 %v764, 0.5
  %v768 = vtanh.pop %v755
  %v769 = vmul.f32 %v766, %v661
  %v770 = vmul.f32 %v765, %v768
  %v771 = vadd.f32 %v769, %v770
  %v772 = vtanh.pop %v771
  %v773 = vmul.f32 %v767, %v772
  %774 = vst [vmem:[#allocation3 + $0x8] sm:$0xff] %v773
  %v775 = vld [vmem:[#allocation2 + $0x40] sm:$0xff]
  %v776 = vld [vmem:[#allocation2 + $0x48] sm:$0xff]
  %v777 = vld [vmem:[#allocation2 + $0x50] sm:$0xff]
  %v778 = vld [vmem:[#allocation2 + $0x58] sm:$0xff]
  %v779 = vpack.c.bf16 %v773, %v773
  %780 = vmatprep.subr.bf16.mxu0 %v525
  %781 = vmatpush1.bf16.msra.mxu0 %v524
  %782 = vmatprep.subr.bf16.mxu0 %v521
  %783 = vmatpush1.bf16.msra.mxu0 %v520
  %784 = vmatprep.subr.bf16.mxu0 %v517
  %785 = vmatpush1.bf16.msra.mxu0 %v516
  %786 = vmatprep.subr.bf16.mxu0 %v513
  %787 = vmatpush1.bf16.msra.mxu0 %v512
  %788 = vmatprep.subr.bf16.mxu0 %v509
  %789 = vmatpush1.bf16.msra.mxu0 %v508
  %790 = vmatprep.subr.bf16.mxu0 %v505
  %791 = vmatpush1.bf16.msra.mxu0 %v504
  %792 = vmatprep.subr.bf16.mxu0 %v501
  %793 = vmatpush1.bf16.msra.mxu0 %v500
  %794 = vmatprep.subr.bf16.mxu0 %v497
  %795 = vmatpush1.bf16.msra.mxu0 %v496
  %796 = vmatprep.subr.bf16.mxu0 0
  %797 = vmatpush2.bf16.msra.mxu0 0
  %798 = vmatprep.subr.bf16.mxu0 0
  %799 = vmatpush2.bf16.msra.mxu0 0
  %800 = vmatprep.subr.bf16.mxu0 0
  %801 = vmatpush2.bf16.msra.mxu0 0
  %802 = vmatprep.subr.bf16.mxu0 0
  %803 = vmatpush2.bf16.msra.mxu0 0
  %804 = vmatprep.subr.bf16.mxu0 0
  %805 = vmatpush2.bf16.msra.mxu0 0
  %806 = vmatprep.subr.bf16.mxu0 0
  %807 = vmatpush2.bf16.msra.mxu0 0
  %808 = vmatprep.subr.bf16.mxu0 0
  %809 = vmatpush2.bf16.msra.mxu0 0
  %810 = vmatprep.subr.bf16.mxu0 0
  %811 = vmatpush2.bf16.msra.mxu0 0
  %812 = vmatprep.mubr.bf16.mxu0 0
  %813 = vmatmul.mubr.bf16.gmra.mxu0 %v779
  %v814 = vpop.f32.mrf.mxu0
  %v815 = vadd.f32 0.0, %v814
  %v816 = vpop.f32.mrf.mxu0
  %v817 = vadd.f32 0.0, %v816
  %v818 = vpop.f32.mrf.mxu0
  %v819 = vpop.f32.mrf.mxu0
  %820 = vdwg.mxu0
  %821 = vmatprep.subr.bf16.mxu0 %v527
  %822 = vmatpush1.bf16.msra.mxu0 %v526
  %823 = vmatprep.subr.bf16.mxu0 %v523
  %824 = vmatpush1.bf16.msra.mxu0 %v522
  %825 = vmatprep.subr.bf16.mxu0 %v519
  %826 = vmatpush1.bf16.msra.mxu0 %v518
  %827 = vmatprep.subr.bf16.mxu0 %v515
  %828 = vmatpush1.bf16.msra.mxu0 %v514
  %829 = vmatprep.subr.bf16.mxu0 %v511
  %830 = vmatpush1.bf16.msra.mxu0 %v510
  %831 = vmatprep.subr.bf16.mxu0 %v507
  %832 = vmatpush1.bf16.msra.mxu0 %v506
  %833 = vmatprep.subr.bf16.mxu0 %v503
  %834 = vmatpush1.bf16.msra.mxu0 %v502
  %835 = vmatprep.subr.bf16.mxu0 %v499
  %836 = vmatpush1.bf16.msra.mxu0 %v498
  %837 = vmatprep.subr.bf16.mxu0 0
  %838 = vmatpush2.bf16.msra.mxu0 0
  %839 = vmatprep.subr.bf16.mxu0 0
  %840 = vmatpush2.bf16.msra.mxu0 0
  %841 = vmatprep.subr.bf16.mxu0 0
  %842 = vmatpush2.bf16.msra.mxu0 0
  %843 = vmatprep.subr.bf16.mxu0 0
  %844 = vmatpush2.bf16.msra.mxu0 0
  %845 = vmatprep.subr.bf16.mxu0 0
  %846 = vmatpush2.bf16.msra.mxu0 0
  %847 = vmatprep.subr.bf16.mxu0 0
  %848 = vmatpush2.bf16.msra.mxu0 0
  %849 = vmatprep.subr.bf16.mxu0 0
  %850 = vmatpush2.bf16.msra.mxu0 0
  %851 = vmatprep.subr.bf16.mxu0 0
  %852 = vmatpush2.bf16.msra.mxu0 0
  %853 = vmatprep.mubr.bf16.mxu0 0
  %854 = vmatmul.mubr.bf16.gmra.mxu0 %v779
  %v855 = vpop.f32.mrf.mxu0
  %v856 = vadd.f32 0.0, %v855
  %v857 = vpop.f32.mrf.mxu0
  %v858 = vadd.f32 0.0, %v857
  %v859 = vpop.f32.mrf.mxu0
  %v860 = vpop.f32.mrf.mxu0
  %861 = vdwg.mxu0
  %v862 = vadd.f32 %v775, %v815
  %v863 = vadd.f32 %v776, %v817
  %v864 = vadd.f32 %v777, %v856
  %v865 = vadd.f32 %v778, %v858
  %v866 = vmul.f32 %v862, 0.5
  %v867 = vmul.f32 %v863, 0.5
  %v868 = vmul.f32 %v864, 0.5
  %v869 = vtanh.pop %v866
  %v870 = vtanh.pop %v867
  %v871 = vtanh.pop %v868
  %v872 = vadd.f32 %v869, 1.0
  %v873 = vadd.f32 %v870, 1.0
  %v874 = vadd.f32 %v871, 1.0
  %v875 = vmul.f32 %v872, 0.5
  %v876 = vmul.f32 %v873, 0.5
  %v877 = vmul.f32 %v874, 0.5
  %v878 = vtanh.pop %v865
  %v879 = vmul.f32 %v876, %v771
  %v880 = vmul.f32 %v875, %v878
  %v881 = vadd.f32 %v879, %v880
  %v882 = vtanh.pop %v881
  %v883 = vmul.f32 %v877, %v882
  %884 = vst [vmem:[#allocation3 + $0x10] sm:$0xff] %v883
  %v885 = vld [vmem:[#allocation2 + $0x60] sm:$0xff]
  %v886 = vld [vmem:[#allocation2 + $0x68] sm:$0xff]
  %v887 = vld [vmem:[#allocation2 + $0x70] sm:$0xff]
  %v888 = vld [vmem:[#allocation2 + $0x78] sm:$0xff]
  %v889 = vpack.c.bf16 %v883, %v883
  %890 = vmatprep.subr.bf16.mxu0 %v525
  %891 = vmatpush1.bf16.msra.mxu0 %v524
  %892 = vmatprep.subr.bf16.mxu0 %v521
  %893 = vmatpush1.bf16.msra.mxu0 %v520
  %894 = vmatprep.subr.bf16.mxu0 %v517
  %895 = vmatpush1.bf16.msra.mxu0 %v516
  %896 = vmatprep.subr.bf16.mxu0 %v513
  %897 = vmatpush1.bf16.msra.mxu0 %v512
  %898 = vmatprep.subr.bf16.mxu0 %v509
  %899 = vmatpush1.bf16.msra.mxu0 %v508
  %900 = vmatprep.subr.bf16.mxu0 %v505
  %901 = vmatpush1.bf16.msra.mxu0 %v504
  %902 = vmatprep.subr.bf16.mxu0 %v501
  %903 = vmatpush1.bf16.msra.mxu0 %v500
  %904 = vmatprep.subr.bf16.mxu0 %v497
  %905 = vmatpush1.bf16.msra.mxu0 %v496
  %906 = vmatprep.subr.bf16.mxu0 0
  %907 = vmatpush2.bf16.msra.mxu0 0
  %908 = vmatprep.subr.bf16.mxu0 0
  %909 = vmatpush2.bf16.msra.mxu0 0
  %910 = vmatprep.subr.bf16.mxu0 0
  %911 = vmatpush2.bf16.msra.mxu0 0
  %912 = vmatprep.subr.bf16.mxu0 0
  %913 = vmatpush2.bf16.msra.mxu0 0
  %914 = vmatprep.subr.bf16.mxu0 0
  %915 = vmatpush2.bf16.msra.mxu0 0
  %916 = vmatprep.subr.bf16.mxu0 0
  %917 = vmatpush2.bf16.msra.mxu0 0
  %918 = vmatprep.subr.bf16.mxu0 0
  %919 = vmatpush2.bf16.msra.mxu0 0
  %920 = vmatprep.subr.bf16.mxu0 0
  %921 = vmatpush2.bf16.msra.mxu0 0
  %922 = vmatprep.mubr.bf16.mxu0 0
  %923 = vmatmul.mubr.bf16.gmra.mxu0 %v889
  %v924 = vpop.f32.mrf.mxu0
  %v925 = vadd.f32 0.0, %v924
  %v926 = vpop.f32.mrf.mxu0
  %v927 = vadd.f32 0.0, %v926
  %v928 = vpop.f32.mrf.mxu0
  %v929 = vpop.f32.mrf.mxu0
  %930 = vdwg.mxu0
  %931 = vmatprep.subr.bf16.mxu0 %v527
  %932 = vmatpush1.bf16.msra.mxu0 %v526
  %933 = vmatprep.subr.bf16.mxu0 %v523
  %934 = vmatpush1.bf16.msra.mxu0 %v522
  %935 = vmatprep.subr.bf16.mxu0 %v519
  %936 = vmatpush1.bf16.msra.mxu0 %v518
  %937 = vmatprep.subr.bf16.mxu0 %v515
  %938 = vmatpush1.bf16.msra.mxu0 %v514
  %939 = vmatprep.subr.bf16.mxu0 %v511
  %940 = vmatpush1.bf16.msra.mxu0 %v510
  %941 = vmatprep.subr.bf16.mxu0 %v507
  %942 = vmatpush1.bf16.msra.mxu0 %v506
  %943 = vmatprep.subr.bf16.mxu0 %v503
  %944 = vmatpush1.bf16.msra.mxu0 %v502
  %945 = vmatprep.subr.bf16.mxu0 %v499
  %946 = vmatpush1.bf16.msra.mxu0 %v498
  %947 = vmatprep.subr.bf16.mxu0 0
  %948 = vmatpush2.bf16.msra.mxu0 0
  %949 = vmatprep.subr.bf16.mxu0 0
  %950 = vmatpush2.bf16.msra.mxu0 0
  %951 = vmatprep.subr.bf16.mxu0 0
  %952 = vmatpush2.bf16.msra.mxu0 0
  %953 = vmatprep.subr.bf16.mxu0 0
  %954 = vmatpush2.bf16.msra.mxu0 0
  %955 = vmatprep.subr.bf16.mxu0 0
  %956 = vmatpush2.bf16.msra.mxu0 0
  %957 = vmatprep.subr.bf16.mxu0 0
  %958 = vmatpush2.bf16.msra.mxu0 0
  %959 = vmatprep.subr.bf16.mxu0 0
  %960 = vmatpush2.bf16.msra.mxu0 0
  %961 = vmatprep.subr.bf16.mxu0 0
  %962 = vmatpush2.bf16.msra.mxu0 0
  %963 = vmatprep.mubr.bf16.mxu0 0
  %964 = vmatmul.mubr.bf16.gmra.mxu0 %v889
  %v965 = vpop.f32.mrf.mxu0
  %v966 = vadd.f32 0.0, %v965
  %v967 = vpop.f32.mrf.mxu0
  %v968 = vadd.f32 0.0, %v967
  %v969 = vpop.f32.mrf.mxu0
  %v970 = vpop.f32.mrf.mxu0
  %971 = vdwg.mxu0
  %v972 = vadd.f32 %v885, %v925
  %v973 = vadd.f32 %v886, %v927
  %v974 = vadd.f32 %v887, %v966
  %v975 = vadd.f32 %v888, %v968
  %v976 = vmul.f32 %v972, 0.5
  %v977 = vmul.f32 %v973, 0.5
  %v978 = vmul.f32 %v974, 0.5
  %v979 = vtanh.pop %v976
  %v980 = vtanh.pop %v977
  %v981 = vtanh.pop %v978
  %v982 = vadd.f32 %v979, 1.0
  %v983 = vadd.f32 %v980, 1.0
  %v984 = vadd.f32 %v981, 1.0
  %v985 = vmul.f32 %v982, 0.5
  %v986 = vmul.f32 %v983, 0.5
  %v987 = vmul.f32 %v984, 0.5
  %v988 = vtanh.pop %v975
  %v989 = vmul.f32 %v986, %v881
  %v990 = vmul.f32 %v985, %v988
  %v991 = vadd.f32 %v989, %v990
  %v992 = vtanh.pop %v991
  %v993 = vmul.f32 %v987, %v992
  %994 = vst [vmem:[#allocation3 + $0x18] sm:$0xff] %v993
  %v995 = vld [vmem:[#allocation2 + $0x80] sm:$0xff]
  %v996 = vld [vmem:[#allocation2 + $0x88] sm:$0xff]
  %v997 = vld [vmem:[#allocation2 + $0x90] sm:$0xff]
  %v998 = vld [vmem:[#allocation2 + $0x98] sm:$0xff]
  %v999 = vpack.c.bf16 %v993, %v993
  %1000 = vmatprep.subr.bf16.mxu0 %v525
  %1001 = vmatpush1.bf16.msra.mxu0 %v524
  %1002 = vmatprep.subr.bf16.mxu0 %v521
  %1003 = vmatpush1.bf16.msra.mxu0 %v520
  %1004 = vmatprep.subr.bf16.mxu0 %v517
  %1005 = vmatpush1.bf16.msra.mxu0 %v516
  %1006 = vmatprep.subr.bf16.mxu0 %v513
  %1007 = vmatpush1.bf16.msra.mxu0 %v512
  %1008 = vmatprep.subr.bf16.mxu0 %v509
  %1009 = vmatpush1.bf16.msra.mxu0 %v508
  %1010 = vmatprep.subr.bf16.mxu0 %v505
  %1011 = vmatpush1.bf16.msra.mxu0 %v504
  %1012 = vmatprep.subr.bf16.mxu0 %v501
  %1013 = vmatpush1.bf16.msra.mxu0 %v500
  %1014 = vmatprep.subr.bf16.mxu0 %v497
  %1015 = vmatpush1.bf16.msra.mxu0 %v496
  %1016 = vmatprep.subr.bf16.mxu0 0
  %1017 = vmatpush2.bf16.msra.mxu0 0
  %1018 = vmatprep.subr.bf16.mxu0 0
  %1019 = vmatpush2.bf16.msra.mxu0 0
  %1020 = vmatprep.subr.bf16.mxu0 0
  %1021 = vmatpush2.bf16.msra.mxu0 0
  %1022 = vmatprep.subr.bf16.mxu0 0
  %1023 = vmatpush2.bf16.msra.mxu0 0
  %1024 = vmatprep.subr.bf16.mxu0 0
  %1025 = vmatpush2.bf16.msra.mxu0 0
  %1026 = vmatprep.subr.bf16.mxu0 0
  %1027 = vmatpush2.bf16.msra.mxu0 0
  %1028 = vmatprep.subr.bf16.mxu0 0
  %1029 = vmatpush2.bf16.msra.mxu0 0
  %1030 = vmatprep.subr.bf16.mxu0 0
  %1031 = vmatpush2.bf16.msra.mxu0 0
  %1032 = vmatprep.mubr.bf16.mxu0 0
  %1033 = vmatmul.mubr.bf16.gmra.mxu0 %v999
  %v1034 = vpop.f32.mrf.mxu0
  %v1035 = vadd.f32 0.0, %v1034
  %v1036 = vpop.f32.mrf.mxu0
  %v1037 = vadd.f32 0.0, %v1036
  %v1038 = vpop.f32.mrf.mxu0
  %v1039 = vpop.f32.mrf.mxu0
  %1040 = vdwg.mxu0
  %1041 = vmatprep.subr.bf16.mxu0 %v527
  %1042 = vmatpush1.bf16.msra.mxu0 %v526
  %1043 = vmatprep.subr.bf16.mxu0 %v523
  %1044 = vmatpush1.bf16.msra.mxu0 %v522
  %1045 = vmatprep.subr.bf16.mxu0 %v519
  %1046 = vmatpush1.bf16.msra.mxu0 %v518
  %1047 = vmatprep.subr.bf16.mxu0 %v515
  %1048 = vmatpush1.bf16.msra.mxu0 %v514
  %1049 = vmatprep.subr.bf16.mxu0 %v511
  %1050 = vmatpush1.bf16.msra.mxu0 %v510
  %1051 = vmatprep.subr.bf16.mxu0 %v507
  %1052 = vmatpush1.bf16.msra.mxu0 %v506
  %1053 = vmatprep.subr.bf16.mxu0 %v503
  %1054 = vmatpush1.bf16.msra.mxu0 %v502
  %1055 = vmatprep.subr.bf16.mxu0 %v499
  %1056 = vmatpush1.bf16.msra.mxu0 %v498
  %1057 = vmatprep.subr.bf16.mxu0 0
  %1058 = vmatpush2.bf16.msra.mxu0 0
  %1059 = vmatprep.subr.bf16.mxu0 0
  %1060 = vmatpush2.bf16.msra.mxu0 0
  %1061 = vmatprep.subr.bf16.mxu0 0
  %1062 = vmatpush2.bf16.msra.mxu0 0
  %1063 = vmatprep.subr.bf16.mxu0 0
  %1064 = vmatpush2.bf16.msra.mxu0 0
  %1065 = vmatprep.subr.bf16.mxu0 0
  %1066 = vmatpush2.bf16.msra.mxu0 0
  %1067 = vmatprep.subr.bf16.mxu0 0
  %1068 = vmatpush2.bf16.msra.mxu0 0
  %1069 = vmatprep.subr.bf16.mxu0 0
  %1070 = vmatpush2.bf16.msra.mxu0 0
  %1071 = vmatprep.subr.bf16.mxu0 0
  %1072 = vmatpush2.bf16.msra.mxu0 0
  %1073 = vmatprep.mubr.bf16.mxu0 0
  %1074 = vmatmul.mubr.bf16.gmra.mxu0 %v999
  %v1075 = vpop.f32.mrf.mxu0
  %v1076 = vadd.f32 0.0, %v1075
  %v1077 = vpop.f32.mrf.mxu0
  %v1078 = vadd.f32 0.0, %v1077
  %v1079 = vpop.f32.mrf.mxu0
  %v1080 = vpop.f32.mrf.mxu0
  %1081 = vdwg.mxu0
  %v1082 = vadd.f32 %v995, %v1035
  %v1083 = vadd.f32 %v996, %v1037
  %v1084 = vadd.f32 %v997, %v1076
  %v1085 = vadd.f32 %v998, %v1078
  %v1086 = vmul.f32 %v1082, 0.5
  %v1087 = vmul.f32 %v1083, 0.5
  %v1088 = vmul.f32 %v1084, 0.5
  %v1089 = vtanh.pop %v1086
  %v1090 = vtanh.pop %v1087
  %v1091 = vtanh.pop %v1088
  %v1092 = vadd.f32 %v1089, 1.0
  %v1093 = vadd.f32 %v1090, 1.0
  %v1094 = vadd.f32 %v1091, 1.0
  %v1095 = vmul.f32 %v1092, 0.5
  %v1096 = vmul.f32 %v1093, 0.5
  %v1097 = vmul.f32 %v1094, 0.5
  %v1098 = vtanh.pop %v1085
  %v1099 = vmul.f32 %v1096, %v991
  %v1100 = vmul.f32 %v1095, %v1098
  %v1101 = vadd.f32 %v1099, %v1100
  %v1102 = vtanh.pop %v1101
  %v1103 = vmul.f32 %v1097, %v1102
  %1104 = vst [vmem:[#allocation3 + $0x20] sm:$0xff] %v1103
  %v1105 = vld [vmem:[#allocation2 + $0xa0] sm:$0xff]
  %v1106 = vld [vmem:[#allocation2 + $0xa8] sm:$0xff]
  %v1107 = vld [vmem:[#allocation2 + $0xb0] sm:$0xff]
  %v1108 = vld [vmem:[#allocation2 + $0xb8] sm:$0xff]
  %v1109 = vpack.c.bf16 %v1103, %v1103
  %1110 = vmatprep.subr.bf16.mxu0 %v525
  %1111 = vmatpush1.bf16.msra.mxu0 %v524
  %1112 = vmatprep.subr.bf16.mxu0 %v521
  %1113 = vmatpush1.bf16.msra.mxu0 %v520
  %1114 = vmatprep.subr.bf16.mxu0 %v517
  %1115 = vmatpush1.bf16.msra.mxu0 %v516
  %1116 = vmatprep.subr.bf16.mxu0 %v513
  %1117 = vmatpush1.bf16.msra.mxu0 %v512
  %1118 = vmatprep.subr.bf16.mxu0 %v509
  %1119 = vmatpush1.bf16.msra.mxu0 %v508
  %1120 = vmatprep.subr.bf16.mxu0 %v505
  %1121 = vmatpush1.bf16.msra.mxu0 %v504
  %1122 = vmatprep.subr.bf16.mxu0 %v501
  %1123 = vmatpush1.bf16.msra.mxu0 %v500
  %1124 = vmatprep.subr.bf16.mxu0 %v497
  %1125 = vmatpush1.bf16.msra.mxu0 %v496
  %1126 = vmatprep.subr.bf16.mxu0 0
  %1127 = vmatpush2.bf16.msra.mxu0 0
  %1128 = vmatprep.subr.bf16.mxu0 0
  %1129 = vmatpush2.bf16.msra.mxu0 0
  %1130 = vmatprep.subr.bf16.mxu0 0
  %1131 = vmatpush2.bf16.msra.mxu0 0
  %1132 = vmatprep.subr.bf16.mxu0 0
  %1133 = vmatpush2.bf16.msra.mxu0 0
  %1134 = vmatprep.subr.bf16.mxu0 0
  %1135 = vmatpush2.bf16.msra.mxu0 0
  %1136 = vmatprep.subr.bf16.mxu0 0
  %1137 = vmatpush2.bf16.msra.mxu0 0
  %1138 = vmatprep.subr.bf16.mxu0 0
  %1139 = vmatpush2.bf16.msra.mxu0 0
  %1140 = vmatprep.subr.bf16.mxu0 0
  %1141 = vmatpush2.bf16.msra.mxu0 0
  %1142 = vmatprep.mubr.bf16.mxu0 0
  %1143 = vmatmul.mubr.bf16.gmra.mxu0 %v1109
  %v1144 = vpop.f32.mrf.mxu0
  %v1145 = vadd.f32 0.0, %v1144
  %v1146 = vpop.f32.mrf.mxu0
  %v1147 = vadd.f32 0.0, %v1146
  %v1148 = vpop.f32.mrf.mxu0
  %v1149 = vpop.f32.mrf.mxu0
  %1150 = vdwg.mxu0
  %1151 = vmatprep.subr.bf16.mxu0 %v527
  %1152 = vmatpush1.bf16.msra.mxu0 %v526
  %1153 = vmatprep.subr.bf16.mxu0 %v523
  %1154 = vmatpush1.bf16.msra.mxu0 %v522
  %1155 = vmatprep.subr.bf16.mxu0 %v519
  %1156 = vmatpush1.bf16.msra.mxu0 %v518
  %1157 = vmatprep.subr.bf16.mxu0 %v515
  %1158 = vmatpush1.bf16.msra.mxu0 %v514
  %1159 = vmatprep.subr.bf16.mxu0 %v511
  %1160 = vmatpush1.bf16.msra.mxu0 %v510
  %1161 = vmatprep.subr.bf16.mxu0 %v507
  %1162 = vmatpush1.bf16.msra.mxu0 %v506
  %1163 = vmatprep.subr.bf16.mxu0 %v503
  %1164 = vmatpush1.bf16.msra.mxu0 %v502
  %1165 = vmatprep.subr.bf16.mxu0 %v499
  %1166 = vmatpush1.bf16.msra.mxu0 %v498
  %1167 = vmatprep.subr.bf16.mxu0 0
  %1168 = vmatpush2.bf16.msra.mxu0 0
  %1169 = vmatprep.subr.bf16.mxu0 0
  %1170 = vmatpush2.bf16.msra.mxu0 0
  %1171 = vmatprep.subr.bf16.mxu0 0
  %1172 = vmatpush2.bf16.msra.mxu0 0
  %1173 = vmatprep.subr.bf16.mxu0 0
  %1174 = vmatpush2.bf16.msra.mxu0 0
  %1175 = vmatprep.subr.bf16.mxu0 0
  %1176 = vmatpush2.bf16.msra.mxu0 0
  %1177 = vmatprep.subr.bf16.mxu0 0
  %1178 = vmatpush2.bf16.msra.mxu0 0
  %1179 = vmatprep.subr.bf16.mxu0 0
  %1180 = vmatpush2.bf16.msra.mxu0 0
  %1181 = vmatprep.subr.bf16.mxu0 0
  %1182 = vmatpush2.bf16.msra.mxu0 0
  %1183 = vmatprep.mubr.bf16.mxu0 0
  %1184 = vmatmul.mubr.bf16.gmra.mxu0 %v1109
  %v1185 = vpop.f32.mrf.mxu0
  %v1186 = vadd.f32 0.0, %v1185
  %v1187 = vpop.f32.mrf.mxu0
  %v1188 = vadd.f32 0.0, %v1187
  %v1189 = vpop.f32.mrf.mxu0
  %v1190 = vpop.f32.mrf.mxu0
  %1191 = vdwg.mxu0
  %v1192 = vadd.f32 %v1105, %v1145
  %v1193 = vadd.f32 %v1106, %v1147
  %v1194 = vadd.f32 %v1107, %v1186
  %v1195 = vadd.f32 %v1108, %v1188
  %v1196 = vmul.f32 %v1192, 0.5
  %v1197 = vmul.f32 %v1193, 0.5
  %v1198 = vmul.f32 %v1194, 0.5
  %v1199 = vtanh.pop %v1196
  %v1200 = vtanh.pop %v1197
  %v1201 = vtanh.pop %v1198
  %v1202 = vadd.f32 %v1199, 1.0
  %v1203 = vadd.f32 %v1200, 1.0
  %v1204 = vadd.f32 %v1201, 1.0
  %v1205 = vmul.f32 %v1202, 0.5
  %v1206 = vmul.f32 %v1203, 0.5
  %v1207 = vmul.f32 %v1204, 0.5
  %v1208 = vtanh.pop %v1195
  %v1209 = vmul.f32 %v1206, %v1101
  %v1210 = vmul.f32 %v1205, %v1208
  %v1211 = vadd.f32 %v1209, %v1210
  %v1212 = vtanh.pop %v1211
  %v1213 = vmul.f32 %v1207, %v1212
  %1214 = vst [vmem:[#allocation3 + $0x28] sm:$0xff] %v1213
  %v1215 = vld [vmem:[#allocation2 + $0xc0] sm:$0xff]
  %v1216 = vld [vmem:[#allocation2 + $0xc8] sm:$0xff]
  %v1217 = vld [vmem:[#allocation2 + $0xd0] sm:$0xff]
  %v1218 = vld [vmem:[#allocation2 + $0xd8] sm:$0xff]
  %v1219 = vpack.c.bf16 %v1213, %v1213
  %1220 = vmatprep.subr.bf16.mxu0 %v525
  %1221 = vmatpush1.bf16.msra.mxu0 %v524
  %1222 = vmatprep.subr.bf16.mxu0 %v521
  %1223 = vmatpush1.bf16.msra.mxu0 %v520
  %1224 = vmatprep.subr.bf16.mxu0 %v517
  %1225 = vmatpush1.bf16.msra.mxu0 %v516
  %1226 = vmatprep.subr.bf16.mxu0 %v513
  %1227 = vmatpush1.bf16.msra.mxu0 %v512
  %1228 = vmatprep.subr.bf16.mxu0 %v509
  %1229 = vmatpush1.bf16.msra.mxu0 %v508
  %1230 = vmatprep.subr.bf16.mxu0 %v505
  %1231 = vmatpush1.bf16.msra.mxu0 %v504
  %1232 = vmatprep.subr.bf16.mxu0 %v501
  %1233 = vmatpush1.bf16.msra.mxu0 %v500
  %1234 = vmatprep.subr.bf16.mxu0 %v497
  %1235 = vmatpush1.bf16.msra.mxu0 %v496
  %1236 = vmatprep.subr.bf16.mxu0 0
  %1237 = vmatpush2.bf16.msra.mxu0 0
  %1238 = vmatprep.subr.bf16.mxu0 0
  %1239 = vmatpush2.bf16.msra.mxu0 0
  %1240 = vmatprep.subr.bf16.mxu0 0
  %1241 = vmatpush2.bf16.msra.mxu0 0
  %1242 = vmatprep.subr.bf16.mxu0 0
  %1243 = vmatpush2.bf16.msra.mxu0 0
  %1244 = vmatprep.subr.bf16.mxu0 0
  %1245 = vmatpush2.bf16.msra.mxu0 0
  %1246 = vmatprep.subr.bf16.mxu0 0
  %1247 = vmatpush2.bf16.msra.mxu0 0
  %1248 = vmatprep.subr.bf16.mxu0 0
  %1249 = vmatpush2.bf16.msra.mxu0 0
  %1250 = vmatprep.subr.bf16.mxu0 0
  %1251 = vmatpush2.bf16.msra.mxu0 0
  %1252 = vmatprep.mubr.bf16.mxu0 0
  %1253 = vmatmul.mubr.bf16.gmra.mxu0 %v1219
  %v1254 = vpop.f32.mrf.mxu0
  %v1255 = vadd.f32 0.0, %v1254
  %v1256 = vpop.f32.mrf.mxu0
  %v1257 = vadd.f32 0.0, %v1256
  %v1258 = vpop.f32.mrf.mxu0
  %v1259 = vpop.f32.mrf.mxu0
  %1260 = vdwg.mxu0
  %1261 = vmatprep.subr.bf16.mxu0 %v527
  %1262 = vmatpush1.bf16.msra.mxu0 %v526
  %1263 = vmatprep.subr.bf16.mxu0 %v523
  %1264 = vmatpush1.bf16.msra.mxu0 %v522
  %1265 = vmatprep.subr.bf16.mxu0 %v519
  %1266 = vmatpush1.bf16.msra.mxu0 %v518
  %1267 = vmatprep.subr.bf16.mxu0 %v515
  %1268 = vmatpush1.bf16.msra.mxu0 %v514
  %1269 = vmatprep.subr.bf16.mxu0 %v511
  %1270 = vmatpush1.bf16.msra.mxu0 %v510
  %1271 = vmatprep.subr.bf16.mxu0 %v507
  %1272 = vmatpush1.bf16.msra.mxu0 %v506
  %1273 = vmatprep.subr.bf16.mxu0 %v503
  %1274 = vmatpush1.bf16.msra.mxu0 %v502
  %1275 = vmatprep.subr.bf16.mxu0 %v499
  %1276 = vmatpush1.bf16.msra.mxu0 %v498
  %1277 = vmatprep.subr.bf16.mxu0 0
  %1278 = vmatpush2.bf16.msra.mxu0 0
  %1279 = vmatprep.subr.bf16.mxu0 0
  %1280 = vmatpush2.bf16.msra.mxu0 0
  %1281 = vmatprep.subr.bf16.mxu0 0
  %1282 = vmatpush2.bf16.msra.mxu0 0
  %1283 = vmatprep.subr.bf16.mxu0 0
  %1284 = vmatpush2.bf16.msra.mxu0 0
  %1285 = vmatprep.subr.bf16.mxu0 0
  %1286 = vmatpush2.bf16.msra.mxu0 0
  %1287 = vmatprep.subr.bf16.mxu0 0
  %1288 = vmatpush2.bf16.msra.mxu0 0
  %1289 = vmatprep.subr.bf16.mxu0 0
  %1290 = vmatpush2.bf16.msra.mxu0 0
  %1291 = vmatprep.subr.bf16.mxu0 0
  %1292 = vmatpush2.bf16.msra.mxu0 0
  %1293 = vmatprep.mubr.bf16.mxu0 0
  %1294 = vmatmul.mubr.bf16.gmra.mxu0 %v1219
  %v1295 = vpop.f32.mrf.mxu0
  %v1296 = vadd.f32 0.0, %v1295
  %v1297 = vpop.f32.mrf.mxu0
  %v1298 = vadd.f32 0.0, %v1297
  %v1299 = vpop.f32.mrf.mxu0
  %v1300 = vpop.f32.mrf.mxu0
  %1301 = vdwg.mxu0
  %v1302 = vadd.f32 %v1215, %v1255
  %v1303 = vadd.f32 %v1216, %v1257
  %v1304 = vadd.f32 %v1217, %v1296
  %v1305 = vadd.f32 %v1218, %v1298
  %v1306 = vmul.f32 %v1302, 0.5
  %v1307 = vmul.f32 %v1303, 0.5
  %v1308 = vmul.f32 %v1304, 0.5
  %v1309 = vtanh.pop %v1306
  %v1310 = vtanh.pop %v1307
  %v1311 = vtanh.pop %v1308
  %v1312 = vadd.f32 %v1309, 1.0
  %v1313 = vadd.f32 %v1310, 1.0
  %v1314 = vadd.f32 %v1311, 1.0
  %v1315 = vmul.f32 %v1312, 0.5
  %v1316 = vmul.f32 %v1313, 0.5
  %v1317 = vmul.f32 %v1314, 0.5
  %v1318 = vtanh.pop %v1305
  %v1319 = vmul.f32 %v1316, %v1211
  %v1320 = vmul.f32 %v1315, %v1318
  %v1321 = vadd.f32 %v1319, %v1320
  %v1322 = vtanh.pop %v1321
  %v1323 = vmul.f32 %v1317, %v1322
  %1324 = vst [vmem:[#allocation3 + $0x30] sm:$0xff] %v1323
  %v1325 = vld [vmem:[#allocation2 + $0xe0] sm:$0xff]
  %v1326 = vld [vmem:[#allocation2 + $0xe8] sm:$0xff]
  %v1327 = vld [vmem:[#allocation2 + $0xf0] sm:$0xff]
  %v1328 = vld [vmem:[#allocation2 + $0xf8] sm:$0xff]
  %v1329 = vpack.c.bf16 %v1323, %v1323
  %1330 = vmatprep.subr.bf16.mxu0 %v525
  %1331 = vmatpush1.bf16.msra.mxu0 %v524
  %1332 = vmatprep.subr.bf16.mxu0 %v521
  %1333 = vmatpush1.bf16.msra.mxu0 %v520
  %1334 = vmatprep.subr.bf16.mxu0 %v517
  %1335 = vmatpush1.bf16.msra.mxu0 %v516
  %1336 = vmatprep.subr.bf16.mxu0 %v513
  %1337 = vmatpush1.bf16.msra.mxu0 %v512
  %1338 = vmatprep.subr.bf16.mxu0 %v509
  %1339 = vmatpush1.bf16.msra.mxu0 %v508
  %1340 = vmatprep.subr.bf16.mxu0 %v505
  %1341 = vmatpush1.bf16.msra.mxu0 %v504
  %1342 = vmatprep.subr.bf16.mxu0 %v501
  %1343 = vmatpush1.bf16.msra.mxu0 %v500
  %1344 = vmatprep.subr.bf16.mxu0 %v497
  %1345 = vmatpush1.bf16.msra.mxu0 %v496
  %1346 = vmatprep.subr.bf16.mxu0 0
  %1347 = vmatpush2.bf16.msra.mxu0 0
  %1348 = vmatprep.subr.bf16.mxu0 0
  %1349 = vmatpush2.bf16.msra.mxu0 0
  %1350 = vmatprep.subr.bf16.mxu0 0
  %1351 = vmatpush2.bf16.msra.mxu0 0
  %1352 = vmatprep.subr.bf16.mxu0 0
  %1353 = vmatpush2.bf16.msra.mxu0 0
  %1354 = vmatprep.subr.bf16.mxu0 0
  %1355 = vmatpush2.bf16.msra.mxu0 0
  %1356 = vmatprep.subr.bf16.mxu0 0
  %1357 = vmatpush2.bf16.msra.mxu0 0
  %1358 = vmatprep.subr.bf16.mxu0 0
  %1359 = vmatpush2.bf16.msra.mxu0 0
  %1360 = vmatprep.subr.bf16.mxu0 0
  %1361 = vmatpush2.bf16.msra.mxu0 0
  %1362 = vmatprep.mubr.bf16.mxu0 0
  %1363 = vmatmul.mubr.bf16.gmra.mxu0 %v1329
  %v1364 = vpop.f32.mrf.mxu0
  %v1365 = vadd.f32 0.0, %v1364
  %v1366 = vpop.f32.mrf.mxu0
  %v1367 = vadd.f32 0.0, %v1366
  %v1368 = vpop.f32.mrf.mxu0
  %v1369 = vpop.f32.mrf.mxu0
  %1370 = vdwg.mxu0
  %1371 = vmatprep.subr.bf16.mxu0 %v527
  %1372 = vmatpush1.bf16.msra.mxu0 %v526
  %1373 = vmatprep.subr.bf16.mxu0 %v523
  %1374 = vmatpush1.bf16.msra.mxu0 %v522
  %1375 = vmatprep.subr.bf16.mxu0 %v519
  %1376 = vmatpush1.bf16.msra.mxu0 %v518
  %1377 = vmatprep.subr.bf16.mxu0 %v515
  %1378 = vmatpush1.bf16.msra.mxu0 %v514
  %1379 = vmatprep.subr.bf16.mxu0 %v511
  %1380 = vmatpush1.bf16.msra.mxu0 %v510
  %1381 = vmatprep.subr.bf16.mxu0 %v507
  %1382 = vmatpush1.bf16.msra.mxu0 %v506
  %1383 = vmatprep.subr.bf16.mxu0 %v503
  %1384 = vmatpush1.bf16.msra.mxu0 %v502
  %1385 = vmatprep.subr.bf16.mxu0 %v499
  %1386 = vmatpush1.bf16.msra.mxu0 %v498
  %1387 = vmatprep.subr.bf16.mxu0 0
  %1388 = vmatpush2.bf16.msra.mxu0 0
  %1389 = vmatprep.subr.bf16.mxu0 0
  %1390 = vmatpush2.bf16.msra.mxu0 0
  %1391 = vmatprep.subr.bf16.mxu0 0
  %1392 = vmatpush2.bf16.msra.mxu0 0
  %1393 = vmatprep.subr.bf16.mxu0 0
  %1394 = vmatpush2.bf16.msra.mxu0 0
  %1395 = vmatprep.subr.bf16.mxu0 0
  %1396 = vmatpush2.bf16.msra.mxu0 0
  %1397 = vmatprep.subr.bf16.mxu0 0
  %1398 = vmatpush2.bf16.msra.mxu0 0
  %1399 = vmatprep.subr.bf16.mxu0 0
  %1400 = vmatpush2.bf16.msra.mxu0 0
  %1401 = vmatprep.subr.bf16.mxu0 0
  %1402 = vmatpush2.bf16.msra.mxu0 0
  %1403 = vmatprep.mubr.bf16.mxu0 0
  %1404 = vmatmul.mubr.bf16.gmra.mxu0 %v1329
  %v1405 = vpop.f32.mrf.mxu0
  %v1406 = vadd.f32 0.0, %v1405
  %v1407 = vpop.f32.mrf.mxu0
  %v1408 = vadd.f32 0.0, %v1407
  %v1409 = vpop.f32.mrf.mxu0
  %v1410 = vpop.f32.mrf.mxu0
  %1411 = vdwg.mxu0
  %v1412 = vadd.f32 %v1325, %v1365
  %v1413 = vadd.f32 %v1326, %v1367
  %v1414 = vadd.f32 %v1327, %v1406
  %v1415 = vadd.f32 %v1328, %v1408
  %v1416 = vmul.f32 %v1412, 0.5
  %v1417 = vmul.f32 %v1413, 0.5
  %v1418 = vmul.f32 %v1414, 0.5
  %v1419 = vtanh.pop %v1416
  %v1420 = vtanh.pop %v1417
  %v1421 = vtanh.pop %v1418
  %v1422 = vadd.f32 %v1419, 1.0
  %v1423 = vadd.f32 %v1420, 1.0
  %v1424 = vadd.f32 %v1421, 1.0
  %v1425 = vmul.f32 %v1422, 0.5
  %v1426 = vmul.f32 %v1423, 0.5
  %v1427 = vmul.f32 %v1424, 0.5
  %v1428 = vtanh.pop %v1415
  %v1429 = vmul.f32 %v1426, %v1321
  %v1430 = vmul.f32 %v1425, %v1428
  %v1431 = vadd.f32 %v1429, %v1430
  %v1432 = vtanh.pop %v1431
  %v1433 = vmul.f32 %v1427, %v1432
  %1434 = vst [vmem:[#allocation3 + $0x38] sm:$0xff] %v1433
  %v1435 = vld [vmem:[#allocation3] sm:$0xff]
  %v1436 = vld [vmem:[#allocation3 + $0x8] sm:$0xff]
  %v1437 = vld [vmem:[#allocation3 + $0x10] sm:$0xff]
  %v1438 = vld [vmem:[#allocation3 + $0x18] sm:$0xff]
  %v1439 = vld [vmem:[#allocation3 + $0x20] sm:$0xff]
  %v1440 = vld [vmem:[#allocation3 + $0x28] sm:$0xff]
  %v1441 = vld [vmem:[#allocation3 + $0x30] sm:$0xff]
  %v1442 = vld [vmem:[#allocation3 + $0x38] sm:$0xff]
  %v1443 = vld [vmem:[%s4] sm:$0xff]
  %v1444 = vld [vmem:[%s4 + $0x8] sm:$0xff]
  %v1445 = vld [vmem:[%s4 + $0x10] sm:$0xff]
  %v1446 = vld [vmem:[%s4 + $0x18] sm:$0xff]
  %v1447 = vld [vmem:[%s4 + $0x20] sm:$0xff]
  %v1448 = vld [vmem:[%s4 + $0x28] sm:$0xff]
  %v1449 = vld [vmem:[%s4 + $0x30] sm:$0xff]
  %v1450 = vld [vmem:[%s4 + $0x38] sm:$0xff]
  %v1451 = vld [vmem:[%s4 + $0x40] sm:$0xff]
  %v1452 = vld [vmem:[%s4 + $0x48] sm:$0xff]
  %v1453 = vld [vmem:[%s4 + $0x50] sm:$0xff]
  %v1454 = vld [vmem:[%s4 + $0x58] sm:$0xff]
  %v1455 = vld [vmem:[%s4 + $0x60] sm:$0xff]
  %v1456 = vld [vmem:[%s4 + $0x68] sm:$0xff]
  %v1457 = vld [vmem:[%s4 + $0x70] sm:$0xff]
  %v1458 = vld [vmem:[%s4 + $0x78] sm:$0xff]
  %v1459 = vld [vmem:[#allocation4] sm:$0x1]
  %v1461 = vlaneseq
  %v1462 = vshrl.u32 %v1461, 7
  %v1463 = vsub.s32 0, %v1462
  %v1464 = vrot.slane %v1459, %v1463
  %1466 = vmatprep.subr.mxu0 0.0
  %1467 = vmatpush1.msra.mxu0 %v1458
  %1468 = vmatprep.subr.mxu0 0.0
  %1469 = vmatpush1.msra.mxu0 %v1457
  %1470 = vmatprep.subr.mxu0 0.0
  %1471 = vmatpush1.msra.mxu0 %v1456
  %1472 = vmatprep.subr.mxu0 0.0
  %1473 = vmatpush1.msra.mxu0 %v1455
  %1474 = vmatprep.subr.mxu0 0.0
  %1475 = vmatpush1.msra.mxu0 %v1454
  %1476 = vmatprep.subr.mxu0 0.0
  %1477 = vmatpush1.msra.mxu0 %v1453
  %1478 = vmatprep.subr.mxu0 0.0
  %1479 = vmatpush1.msra.mxu0 %v1452
  %1480 = vmatprep.subr.mxu0 0.0
  %1481 = vmatpush1.msra.mxu0 %v1451
  %1482 = vmatprep.subr.mxu0 0.0
  %1483 = vmatpush1.msra.mxu0 %v1450
  %1484 = vmatprep.subr.mxu0 0.0
  %1485 = vmatpush1.msra.mxu0 %v1449
  %1486 = vmatprep.subr.mxu0 0.0
  %1487 = vmatpush1.msra.mxu0 %v1448
  %1488 = vmatprep.subr.mxu0 0.0
  %1489 = vmatpush1.msra.mxu0 %v1447
  %1490 = vmatprep.subr.mxu0 0.0
  %1491 = vmatpush1.msra.mxu0 %v1446
  %1492 = vmatprep.subr.mxu0 0.0
  %1493 = vmatpush1.msra.mxu0 %v1445
  %1494 = vmatprep.subr.mxu0 0.0
  %1495 = vmatpush1.msra.mxu0 %v1444
  %1496 = vmatprep.subr.mxu0 0.0
  %1497 = vmatpush1.msra.mxu0 %v1443
  %1498 = vmatprep.subr.mxu0 0.0
  %1499 = vmatpush2.msra.mxu0 0.0
  %1500 = vmatprep.subr.mxu0 0.0
  %1501 = vmatpush2.msra.mxu0 0.0
  %1502 = vmatprep.subr.mxu0 0.0
  %1503 = vmatpush2.msra.mxu0 0.0
  %1504 = vmatprep.subr.mxu0 0.0
  %1505 = vmatpush2.msra.mxu0 0.0
  %1506 = vmatprep.subr.mxu0 0.0
  %1507 = vmatpush2.msra.mxu0 0.0
  %1508 = vmatprep.subr.mxu0 0.0
  %1509 = vmatpush2.msra.mxu0 0.0
  %1510 = vmatprep.subr.mxu0 0.0
  %1511 = vmatpush2.msra.mxu0 0.0
  %1512 = vmatprep.subr.mxu0 0.0
  %1513 = vmatpush2.msra.mxu0 0.0
  %1514 = vmatprep.subr.mxu0 0.0
  %1515 = vmatpush2.msra.mxu0 0.0
  %1516 = vmatprep.subr.mxu0 0.0
  %1517 = vmatpush2.msra.mxu0 0.0
  %1518 = vmatprep.subr.mxu0 0.0
  %1519 = vmatpush2.msra.mxu0 0.0
  %1520 = vmatprep.subr.mxu0 0.0
  %1521 = vmatpush2.msra.mxu0 0.0
  %1522 = vmatprep.subr.mxu0 0.0
  %1523 = vmatpush2.msra.mxu0 0.0
  %1524 = vmatprep.subr.mxu0 0.0
  %1525 = vmatpush2.msra.mxu0 0.0
  %1526 = vmatprep.subr.mxu0 0.0
  %1527 = vmatpush2.msra.mxu0 0.0
  %1528 = vmatprep.subr.mxu0 0.0
  %1529 = vmatpush2.msra.mxu0 0.0
  %1530 = vmatprep.mubr.f32.mxu0 0.0
  %1531 = vmatmul.mubr.f32.gmra.mxu0 %v1435
  %v1532 = vpop.f32.mrf.mxu0
  %v1533 = vadd.f32 %v1464, %v1532
  %v1534 = vpop.f32.mrf.mxu0
  %1535 = vmatprep.mubr.f32.mxu0 0.0
  %1536 = vmatmul.mubr.f32.gmra.mxu0 %v1436
  %v1537 = vpop.f32.mrf.mxu0
  %v1538 = vadd.f32 %v1464, %v1537
  %v1539 = vpop.f32.mrf.mxu0
  %1540 = vmatprep.mubr.f32.mxu0 0.0
  %1541 = vmatmul.mubr.f32.gmra.mxu0 %v1437
  %v1542 = vpop.f32.mrf.mxu0
  %v1543 = vadd.f32 %v1464, %v1542
  %v1544 = vpop.f32.mrf.mxu0
  %1545 = vmatprep.mubr.f32.mxu0 0.0
  %1546 = vmatmul.mubr.f32.gmra.mxu0 %v1438
  %v1547 = vpop.f32.mrf.mxu0
  %v1548 = vadd.f32 %v1464, %v1547
  %v1549 = vpop.f32.mrf.mxu0
  %1550 = vmatprep.mubr.f32.mxu0 0.0
  %1551 = vmatmul.mubr.f32.gmra.mxu0 %v1439
  %v1552 = vpop.f32.mrf.mxu0
  %v1553 = vadd.f32 %v1464, %v1552
  %v1554 = vpop.f32.mrf.mxu0
  %1555 = vmatprep.mubr.f32.mxu0 0.0
  %1556 = vmatmul.mubr.f32.gmra.mxu0 %v1440
  %v1557 = vpop.f32.mrf.mxu0
  %v1558 = vadd.f32 %v1464, %v1557
  %v1559 = vpop.f32.mrf.mxu0
  %1560 = vmatprep.mubr.f32.mxu0 0.0
  %1561 = vmatmul.mubr.f32.gmra.mxu0 %v1441
  %v1562 = vpop.f32.mrf.mxu0
  %v1563 = vadd.f32 %v1464, %v1562
  %v1564 = vpop.f32.mrf.mxu0
  %1565 = vmatprep.mubr.f32.mxu0 0.0
  %1566 = vmatmul.mubr.f32.gmra.mxu0 %v1442
  %v1567 = vpop.f32.mrf.mxu0
  %v1568 = vadd.f32 %v1464, %v1567
  %v1569 = vpop.f32.mrf.mxu0
  %1570 = vdwg.mxu0
  %vm1571 = vcmask 7168
  %1572 = vst.msk [vmem:[%s6] sm:$0xff] %vm1571, %v1533
  %1573 = vst.msk [vmem:[%s6 + $0x8] sm:$0xff] %vm1571, %v1538
  %1574 = vst.msk [vmem:[%s6 + $0x10] sm:$0xff] %vm1571, %v1543
  %1575 = vst.msk [vmem:[%s6 + $0x18] sm:$0xff] %vm1571, %v1548
  %1576 = vst.msk [vmem:[%s6 + $0x20] sm:$0xff] %vm1571, %v1553
  %1577 = vst.msk [vmem:[%s6 + $0x28] sm:$0xff] %vm1571, %v1558
  %1578 = vst.msk [vmem:[%s6 + $0x30] sm:$0xff] %vm1571, %v1563
  %1579 = vst.msk [vmem:[%s6 + $0x38] sm:$0xff] %vm1571, %v1568
  // Predicated region
  $region26: #{lstm_forward.1} parent=0 // pred_check
    _
  $region27: #{lstm_forward.1} parent=0 // pred_check_branch
    %1581 = sbr.rel (0) target = $region29
  $region28: #{lstm_forward.1} parent=0 // pred_region
    _
  $region29: #{lstm_forward.1} parent=0 // pred_fallthru
    _
  // Predicated region
  $region30: #{lstm_forward.1} parent=0 // pred_check
    _
  $region31: #{lstm_forward.1} parent=0 // pred_check_branch
    %1583 = sbr.rel (0) target = $region33
  $region32: #{lstm_forward.1} parent=0 // pred_region
    _
  $region33: #{lstm_forward.1} parent=0 // pred_fallthru
    _

</llo_original>
